<compile_context>
chip_gen: v7x
topology: tpu7x:2x2x1
jax: 0.10.0
libtpu: 0.0.40
codegen_flags: <defaults>
</compile_context>

<pallas_src>
import jax
import jax.numpy as jnp
from jax.experimental import pallas as pl
from jax.experimental.pallas import tpu as pltpu


# Geometry implied by CNN_model1: fc1 expects 6*10*10, so input is [N, 2, 14, 14].
KSIZE = 3
IN_C, IN_H, IN_W = 2, 14, 14
C1_OUT, C1_HO, C1_WO = 4, 12, 12
C2_OUT, C2_HO, C2_WO = 6, 10, 10
IN_FEAT = IN_H * IN_W * IN_C               # 392
C1_FEAT = C1_HO * C1_WO * C1_OUT           # 576
C2_FEAT = C2_HO * C2_WO * C2_OUT           # 600 (== fc1 input features)
FC1_OUT = 100
OUT_LANES = 128                            # lane-dense result tile


# -----------------------------------------------------------------------------
# Fused kernel: conv1+relu -> conv2+relu -> fc1+relu -> fc2+sigmoid.
# Every layer is a plain [M, K] x [K, N] matmul with the batch on the sublane
# (M) axis; intermediates never leave vregs.
# -----------------------------------------------------------------------------
def _cnn_fused_kernel(x_ref, w1_ref, b1_ref, w2_ref, b2_ref,
                      w3_ref, b3_ref, w4_ref, b4_ref, o_ref):
    f32, bf16 = jnp.float32, jnp.bfloat16

    x = x_ref[...]                                               # [TB, 392] bf16
    h1 = jnp.maximum(
        jnp.dot(x, w1_ref[...], preferred_element_type=f32)
        + b1_ref[...], 0.0)                                      # [TB, 576] f32
    h2 = jnp.maximum(
        jnp.dot(h1.astype(bf16), w2_ref[...], preferred_element_type=f32)
        + b2_ref[...], 0.0)                                      # [TB, 600] == flat HWC
    h3 = jnp.maximum(
        jnp.dot(h2.astype(bf16), w3_ref[...], preferred_element_type=f32)
        + b3_ref[...], 0.0)                                      # [TB, 100]
    y = jnp.dot(h3.astype(bf16), w4_ref[...],
                preferred_element_type=f32) + b4_ref[...]        # [TB, 128]
    # Exact sigmoid (EUP exp + exact reciprocal); column 0 is the real output.
    o_ref[...] = (1.0 / (1.0 + jnp.exp(-y))).astype(o_ref.dtype)


# -----------------------------------------------------------------------------
# One-time (init) weight transforms: PyTorch layout -> kernel layout.
# -----------------------------------------------------------------------------
def prepare_kernel_params(torch_params):
    (w_c1, b_c1, w_c2, b_c2, w_f1, b_f1, w_f2, b_f2) = torch_params
    f32, bf16 = jnp.float32, jnp.bfloat16

    def conv_as_matrix(w, h_in, w_in):
        # w: [Cout, Cin, kh, kw] -> dense [h_in*w_in*Cin, h_out*w_out*Cout]
        # matrix implementing the VALID conv on an (h, w, c)-flattened row.
        cout, cin, kh, kw = w.shape
        h_out, w_out = h_in - kh + 1, w_in - kw + 1
        mat = jnp.zeros((h_in * w_in * cin, h_out * w_out * cout), f32)
        for dh in range(kh):
            sh = jnp.zeros((h_in, h_out), f32).at[
                jnp.arange(h_out) + dh, jnp.arange(h_out)].set(1.0)
            for dw in range(kw):
                sw = jnp.zeros((w_in, w_out), f32).at[
                    jnp.arange(w_out) + dw, jnp.arange(w_out)].set(1.0)
                tap = w[:, :, dh, dw].T.astype(f32)              # [Cin, Cout]
                mat = mat + jnp.kron(sh, jnp.kron(sw, tap))
        return mat

    w1 = conv_as_matrix(w_c1, IN_H, IN_W).astype(bf16)           # [392, 576]
    w2 = conv_as_matrix(w_c2, C1_HO, C1_WO).astype(bf16)         # [576, 600]
    b1 = jnp.tile(b_c1.astype(f32), C1_HO * C1_WO)[None, :]      # [1, 576]
    b2 = jnp.tile(b_c2.astype(f32), C2_HO * C2_WO)[None, :]      # [1, 600]

    # fc1 weight: permute torch's CHW feature order to our HWC flatten order,
    # pre-transpose to [600, 100].
    w3 = (w_f1.astype(f32).reshape(FC1_OUT, C2_OUT, C2_HO, C2_WO)
          .transpose(2, 3, 1, 0).reshape(C2_FEAT, FC1_OUT)).astype(bf16)
    b3 = b_f1.astype(f32)[None, :]                               # [1, 100]

    # fc2 weight zero-padded to 128 output lanes -> lane-dense result tile.
    w4 = jnp.zeros((FC1_OUT, OUT_LANES), f32).at[:, 0].set(
        w_f2.astype(f32).reshape(-1)).astype(bf16)               # [100, 128]
    b4 = jnp.full((1, OUT_LANES), b_f2.astype(f32)[0], f32)      # [1, 128]
    return (w1, b1, w2, b2, w3, b3, w4, b4)


# -----------------------------------------------------------------------------
# Forward pass wrapper (single fused pallas_call, batch-parallel grid).
# -----------------------------------------------------------------------------
def cnn_model1_forward(x_nchw, kernel_params):
    w1, b1, w2, b2, w3, b3, w4, b4 = kernel_params
    n = x_nchw.shape[0]

    # Single layout change at the boundary: NCHW -> flattened HWC rows.
    x_flat = jnp.transpose(x_nchw.astype(jnp.float32), (0, 2, 3, 1)).reshape(
        n, IN_FEAT)

    # Batch blocks on the sublane axis; pad N up to a block multiple.
    tb = 8 if n <= 64 else 128
    n_pad = tb * ((n + tb - 1) // tb)
    if n_pad != n:
        x_flat = jnp.pad(x_flat, ((0, n_pad - n), (0, 0)))
    x_flat = x_flat.astype(jnp.bfloat16)

    grid = (n_pad // tb,)
    flops = 2 * n_pad * (IN_FEAT * C1_FEAT + C1_FEAT * C2_FEAT
                         + C2_FEAT * FC1_OUT + FC1_OUT * OUT_LANES)
    bytes_accessed = (int(x_flat.size) * 2
                      + sum(int(w.size) * 2 for w in (w1, w2, w3, w4))
                      + sum(int(b.size) * 4 for b in (b1, b2, b3, b4))
                      + n_pad * OUT_LANES * 4)

    out = pl.pallas_call(
        _cnn_fused_kernel,
        out_shape=jax.ShapeDtypeStruct((n_pad, OUT_LANES), jnp.float32),
        grid=grid,
        in_specs=[
            pl.BlockSpec((tb, IN_FEAT), lambda i: (i, 0)),   # x: per-batch block
            pl.BlockSpec(w1.shape, lambda i: (0, 0)),
            pl.BlockSpec(b1.shape, lambda i: (0, 0)),
            pl.BlockSpec(w2.shape, lambda i: (0, 0)),
            pl.BlockSpec(b2.shape, lambda i: (0, 0)),
            pl.BlockSpec(w3.shape, lambda i: (0, 0)),
            pl.BlockSpec(b3.shape, lambda i: (0, 0)),
            pl.BlockSpec(w4.shape, lambda i: (0, 0)),
            pl.BlockSpec(b4.shape, lambda i: (0, 0)),
        ],
        out_specs=pl.BlockSpec((tb, OUT_LANES), lambda i: (i, 0)),
        compiler_params=pltpu.CompilerParams(
            dimension_semantics=("parallel",)),
        cost_estimate=pl.CostEstimate(flops=flops,
                                      transcendentals=n_pad * OUT_LANES,
                                      bytes_accessed=bytes_accessed),
    )(x_flat, w1, b1, w2, b2, w3, b3, w4, b4)

    return out[:n, :1]


# -----------------------------------------------------------------------------
# Deterministic synthetic parameters (PyTorch layout) + pure-JAX reference.
# -----------------------------------------------------------------------------
def init_params(key):
    ks = jax.random.split(key, 8)
    w_c1 = jax.random.normal(ks[0], (C1_OUT, IN_C, KSIZE, KSIZE), jnp.float32) * 0.2
    b_c1 = jax.random.normal(ks[1], (C1_OUT,), jnp.float32) * 0.05
    w_c2 = jax.random.normal(ks[2], (C2_OUT, C1_OUT, KSIZE, KSIZE), jnp.float32) * 0.15
    b_c2 = jax.random.normal(ks[3], (C2_OUT,), jnp.float32) * 0.05
    w_f1 = jax.random.normal(ks[4], (FC1_OUT, C2_FEAT), jnp.float32) * 0.04
    b_f1 = jax.random.normal(ks[5], (FC1_OUT,), jnp.float32) * 0.05
    w_f2 = jax.random.normal(ks[6], (1, FC1_OUT), jnp.float32) * 0.1
    b_f2 = jax.random.normal(ks[7], (1,), jnp.float32) * 0.05
    return (w_c1, b_c1, w_c2, b_c2, w_f1, b_f1, w_f2, b_f2)


def reference_forward(x, torch_params):
    (w_c1, b_c1, w_c2, b_c2, w_f1, b_f1, w_f2, b_f2) = torch_params
    dn = ("NCHW", "OIHW", "NCHW")
    h = jax.lax.conv_general_dilated(x, w_c1, (1, 1), "VALID", dimension_numbers=dn)
    h = jnp.maximum(h + b_c1[None, :, None, None], 0.0)
    h = jax.lax.conv_general_dilated(h, w_c2, (1, 1), "VALID", dimension_numbers=dn)
    h = jnp.maximum(h + b_c2[None, :, None, None], 0.0)
    flat = h.reshape(h.shape[0], -1)
    h3 = jnp.maximum(flat @ w_f1.T + b_f1, 0.0)
    return jax.nn.sigmoid(h3 @ w_f2.T + b_f2)


if __name__ == "__main__":
    key = jax.random.PRNGKey(0)
    kx, kp = jax.random.split(key)
    x = jax.random.normal(kx, (2, IN_C, IN_H, IN_W), jnp.float32)

    torch_params = init_params(kp)                    # PyTorch-layout params
    kparams = prepare_kernel_params(torch_params)     # hoisted weight transforms

    fwd = jax.jit(cnn_model1_forward)
    out = jax.block_until_ready(fwd(x, kparams))

    assert out.shape == (2, 1) and out.dtype == jnp.float32
    assert bool(jnp.all((out >= 0.0) & (out <= 1.0)))

    ref = jax.block_until_ready(reference_forward(x, torch_params))
    assert bool(jnp.all(jnp.abs(out - ref) < 2e-2)), (out, ref)
    print("KERNEL_OK")
</pallas_src>

<mosaic_0001>
module attributes {stable_mosaic.version = 11 : i64} {
  func.func @_cnn_fused_kernel(%arg0: i32, %arg1: memref<8x392xbf16, #tpu.memory_space<vmem>>, %arg2: memref<392x576xbf16, #tpu.memory_space<vmem>>, %arg3: memref<1x576xf32, #tpu.memory_space<vmem>>, %arg4: memref<576x600xbf16, #tpu.memory_space<vmem>>, %arg5: memref<1x600xf32, #tpu.memory_space<vmem>>, %arg6: memref<600x100xbf16, #tpu.memory_space<vmem>>, %arg7: memref<1x100xf32, #tpu.memory_space<vmem>>, %arg8: memref<100x128xbf16, #tpu.memory_space<vmem>>, %arg9: memref<1x128xf32, #tpu.memory_space<vmem>>, %arg10: memref<8x128xf32, #tpu.memory_space<vmem>>) attributes {dimension_semantics = [#tpu.dimension_semantics<parallel>], iteration_bounds = array<i64: 1>, scalar_prefetch = 0 : i64, scratch_operands = 0 : i64, tpu.core_type = #tpu.core_type<tc>, window_params = [{transform_indices = @transform_0, window_bounds = array<i64: 8, 392>}, {pipeline_mode = #tpu.pipeline_mode<synchronous>, transform_indices = @transform_1, window_bounds = array<i64: 392, 576>}, {pipeline_mode = #tpu.pipeline_mode<synchronous>, transform_indices = @transform_2, window_bounds = array<i64: 1, 576>}, {pipeline_mode = #tpu.pipeline_mode<synchronous>, transform_indices = @transform_3, window_bounds = array<i64: 576, 600>}, {pipeline_mode = #tpu.pipeline_mode<synchronous>, transform_indices = @transform_4, window_bounds = array<i64: 1, 600>}, {pipeline_mode = #tpu.pipeline_mode<synchronous>, transform_indices = @transform_5, window_bounds = array<i64: 600, 100>}, {pipeline_mode = #tpu.pipeline_mode<synchronous>, transform_indices = @transform_6, window_bounds = array<i64: 1, 100>}, {pipeline_mode = #tpu.pipeline_mode<synchronous>, transform_indices = @transform_7, window_bounds = array<i64: 100, 128>}, {pipeline_mode = #tpu.pipeline_mode<synchronous>, transform_indices = @transform_8, window_bounds = array<i64: 1, 128>}, {transform_indices = @transform_9, window_bounds = array<i64: 8, 128>}]} {
    %c0 = arith.constant 0 : index
    %c0_0 = arith.constant 0 : index
    %0 = vector.load %arg1[%c0, %c0_0] : memref<8x392xbf16, #tpu.memory_space<vmem>>, vector<8x392xbf16>
    %c0_1 = arith.constant 0 : index
    %c0_2 = arith.constant 0 : index
    %1 = vector.load %arg2[%c0_1, %c0_2] : memref<392x576xbf16, #tpu.memory_space<vmem>>, vector<392x576xbf16>
    %cst = arith.constant dense<0.000000e+00> : vector<8x576xf32>
    %2 = tpu.matmul %0, %1, %cst {dimension_numbers = #tpu.dot_dimension_numbers<[1], [0], [0], [1], [0, 0, 1, 1], [], []>} : vector<8x392xbf16>, vector<392x576xbf16>, vector<8x576xf32> -> vector<8x576xf32>
    %c0_3 = arith.constant 0 : index
    %c0_4 = arith.constant 0 : index
    %3 = vector.load %arg3[%c0_3, %c0_4] : memref<1x576xf32, #tpu.memory_space<vmem>>, vector<1x576xf32>
    %4 = vector.broadcast %3 : vector<1x576xf32> to vector<8x576xf32>
    %5 = arith.addf %2, %4 : vector<8x576xf32>
    %cst_5 = arith.constant 0.000000e+00 : f32
    %6 = vector.broadcast %cst_5 : f32 to vector<8x576xf32>
    %7 = arith.maximumf %5, %6 : vector<8x576xf32>
    %8 = arith.truncf %7 : vector<8x576xf32> to vector<8x576xbf16>
    %c0_6 = arith.constant 0 : index
    %c0_7 = arith.constant 0 : index
    %9 = vector.load %arg4[%c0_6, %c0_7] : memref<576x600xbf16, #tpu.memory_space<vmem>>, vector<576x600xbf16>
    %cst_8 = arith.constant dense<0.000000e+00> : vector<8x600xf32>
    %10 = tpu.matmul %8, %9, %cst_8 {dimension_numbers = #tpu.dot_dimension_numbers<[1], [0], [0], [1], [0, 0, 1, 1], [], []>} : vector<8x576xbf16>, vector<576x600xbf16>, vector<8x600xf32> -> vector<8x600xf32>
    %c0_9 = arith.constant 0 : index
    %c0_10 = arith.constant 0 : index
    %11 = vector.load %arg5[%c0_9, %c0_10] : memref<1x600xf32, #tpu.memory_space<vmem>>, vector<1x600xf32>
    %12 = vector.broadcast %11 : vector<1x600xf32> to vector<8x600xf32>
    %13 = arith.addf %10, %12 : vector<8x600xf32>
    %cst_11 = arith.constant 0.000000e+00 : f32
    %14 = vector.broadcast %cst_11 : f32 to vector<8x600xf32>
    %15 = arith.maximumf %13, %14 : vector<8x600xf32>
    %16 = arith.truncf %15 : vector<8x600xf32> to vector<8x600xbf16>
    %c0_12 = arith.constant 0 : index
    %c0_13 = arith.constant 0 : index
    %17 = vector.load %arg6[%c0_12, %c0_13] : memref<600x100xbf16, #tpu.memory_space<vmem>>, vector<600x100xbf16>
    %cst_14 = arith.constant dense<0.000000e+00> : vector<8x100xf32>
    %18 = tpu.matmul %16, %17, %cst_14 {dimension_numbers = #tpu.dot_dimension_numbers<[1], [0], [0], [1], [0, 0, 1, 1], [], []>} : vector<8x600xbf16>, vector<600x100xbf16>, vector<8x100xf32> -> vector<8x100xf32>
    %c0_15 = arith.constant 0 : index
    %c0_16 = arith.constant 0 : index
    %19 = vector.load %arg7[%c0_15, %c0_16] : memref<1x100xf32, #tpu.memory_space<vmem>>, vector<1x100xf32>
    %20 = vector.broadcast %19 : vector<1x100xf32> to vector<8x100xf32>
    %21 = arith.addf %18, %20 : vector<8x100xf32>
    %cst_17 = arith.constant 0.000000e+00 : f32
    %22 = vector.broadcast %cst_17 : f32 to vector<8x100xf32>
    %23 = arith.maximumf %21, %22 : vector<8x100xf32>
    %24 = arith.truncf %23 : vector<8x100xf32> to vector<8x100xbf16>
    %c0_18 = arith.constant 0 : index
    %c0_19 = arith.constant 0 : index
    %25 = vector.load %arg8[%c0_18, %c0_19] : memref<100x128xbf16, #tpu.memory_space<vmem>>, vector<100x128xbf16>
    %cst_20 = arith.constant dense<0.000000e+00> : vector<8x128xf32>
    %26 = tpu.matmul %24, %25, %cst_20 {dimension_numbers = #tpu.dot_dimension_numbers<[1], [0], [0], [1], [0, 0, 1, 1], [], []>} : vector<8x100xbf16>, vector<100x128xbf16>, vector<8x128xf32> -> vector<8x128xf32>
    %c0_21 = arith.constant 0 : index
    %c0_22 = arith.constant 0 : index
    %27 = vector.load %arg9[%c0_21, %c0_22] : memref<1x128xf32, #tpu.memory_space<vmem>>, vector<1x128xf32>
    %28 = vector.broadcast %27 : vector<1x128xf32> to vector<8x128xf32>
    %29 = arith.addf %26, %28 : vector<8x128xf32>
    %cst_23 = arith.constant 0.000000e+00 : f32
    %30 = vector.broadcast %cst_23 : f32 to vector<8x128xf32>
    %31 = arith.subf %30, %29 : vector<8x128xf32>
    %32 = math.exp %31 : vector<8x128xf32>
    %cst_24 = arith.constant 1.000000e+00 : f32
    %33 = vector.broadcast %cst_24 : f32 to vector<8x128xf32>
    %34 = arith.addf %33, %32 : vector<8x128xf32>
    %cst_25 = arith.constant 1.000000e+00 : f32
    %35 = vector.broadcast %cst_25 : f32 to vector<8x128xf32>
    %36 = arith.divf %35, %34 : vector<8x128xf32>
    %c0_26 = arith.constant 0 : index
    %c0_27 = arith.constant 0 : index
    %37 = vector.load %arg10[%c0_26, %c0_27] : memref<8x128xf32, #tpu.memory_space<vmem>>, vector<8x128xf32>
    tpu.vector_store %arg10[%c0_26, %c0_27], %36 {strides = array<i32>} : memref<8x128xf32, #tpu.memory_space<vmem>>, vector<8x128xf32>,
    return
  }
  func.func @transform_0(%arg0: i32) -> (i32, i32) {
    %c0_i32 = arith.constant 0 : i32
    %c0_i32_0 = arith.constant 0 : i32
    return %arg0, %c0_i32 : i32, i32
  }
  func.func @transform_1(%arg0: i32) -> (i32, i32) {
    %c0_i32 = arith.constant 0 : i32
    %c0_i32_0 = arith.constant 0 : i32
    %c0_i32_1 = arith.constant 0 : i32
    return %c0_i32, %c0_i32_0 : i32, i32
  }
  func.func @transform_2(%arg0: i32) -> (i32, i32) {
    %c0_i32 = arith.constant 0 : i32
    %c0_i32_0 = arith.constant 0 : i32
    %c0_i32_1 = arith.constant 0 : i32
    return %c0_i32, %c0_i32_0 : i32, i32
  }
  func.func @transform_3(%arg0: i32) -> (i32, i32) {
    %c0_i32 = arith.constant 0 : i32
    %c0_i32_0 = arith.constant 0 : i32
    %c0_i32_1 = arith.constant 0 : i32
    return %c0_i32, %c0_i32_0 : i32, i32
  }
  func.func @transform_4(%arg0: i32) -> (i32, i32) {
    %c0_i32 = arith.constant 0 : i32
    %c0_i32_0 = arith.constant 0 : i32
    %c0_i32_1 = arith.constant 0 : i32
    return %c0_i32, %c0_i32_0 : i32, i32
  }
  func.func @transform_5(%arg0: i32) -> (i32, i32) {
    %c0_i32 = arith.constant 0 : i32
    %c0_i32_0 = arith.constant 0 : i32
    %c0_i32_1 = arith.constant 0 : i32
    return %c0_i32, %c0_i32_0 : i32, i32
  }
  func.func @transform_6(%arg0: i32) -> (i32, i32) {
    %c0_i32 = arith.constant 0 : i32
    %c0_i32_0 = arith.constant 0 : i32
    %c0_i32_1 = arith.constant 0 : i32
    return %c0_i32, %c0_i32_0 : i32, i32
  }
  func.func @transform_7(%arg0: i32) -> (i32, i32) {
    %c0_i32 = arith.constant 0 : i32
    %c0_i32_0 = arith.constant 0 : i32
    %c0_i32_1 = arith.constant 0 : i32
    return %c0_i32, %c0_i32_0 : i32, i32
  }
  func.func @transform_8(%arg0: i32) -> (i32, i32) {
    %c0_i32 = arith.constant 0 : i32
    %c0_i32_0 = arith.constant 0 : i32
    %c0_i32_1 = arith.constant 0 : i32
    return %c0_i32, %c0_i32_0 : i32, i32
  }
  func.func @transform_9(%arg0: i32) -> (i32, i32) {
    %c0_i32 = arith.constant 0 : i32
    %c0_i32_0 = arith.constant 0 : i32
    return %arg0, %c0_i32 : i32, i32
  }
}

</mosaic_0001>

<llo_original>
// kernel: cnn_model1_forward.1
$region0: #{cnn_model1_forward.1}
  #allocation0 [shape = 'u32[]', space=smem, size = 0x4, offset = 0x4, fixed_abs, tag = 'smem constant byte address 0x4 - core index']
  #allocation1 [shape = 'u32[144,128]{1,0:T(1,128)}', space=vmem, size = 0x12000, scoped, tag = 'internal scratch']
  %s0 = inlined_call_operand.vmem [shape: bf16[8,392], index: 0, kind: input, shape index: {}]
  %s1 = inlined_call_operand.vmem [shape: bf16[392,576], index: 1, kind: input, shape index: {}]
  %s2 = inlined_call_operand.vmem [shape: f32[1,576], index: 2, kind: input, shape index: {}]
  %s3 = inlined_call_operand.hbm [shape: bf16[576,600], index: 3, kind: input, shape index: {}]
  %s4 = inlined_call_operand.vmem [shape: f32[1,600], index: 4, kind: input, shape index: {}]
  %s5 = inlined_call_operand.vmem [shape: bf16[600,100], index: 5, kind: input, shape index: {}]
  %s6 = inlined_call_operand.vmem [shape: f32[1,100], index: 6, kind: input, shape index: {}]
  %s7 = inlined_call_operand.vmem [shape: bf16[100,128], index: 7, kind: input, shape index: {}]
  %s8 = inlined_call_operand.vmem [shape: f32[1,128], index: 8, kind: input, shape index: {}]
  %s9 = inlined_call_operand.vmem [shape: f32[8,128], index: 9, kind: output, shape index: {}]
  %s10 = sld [smem:[#allocation0]]
  $region50: #{cnn_model1_forward.1} parent=0
    _
  %s12 = ssub.s32 1, %s10
  %s13 = scalar_select 0, %s12, %s10
  $region1: #{cnn_model1_forward.1} parent=0
    #allocation2 [shape = 'u8[737280]{0}', space=vmem, size = 0xb4000, scoped, tag = 'input window, operand 3, single buffered']
    #allocation3 [shape = 's32[1]{0}', space=sflag, size = 0x4, scoped, tag = 'scoped memory for cnn_model1_forward.1']
    %14 = vsyncpa [#allocation3], 0
    // Predicated region
    $region2: #{cnn_model1_forward.1} parent=1 // pred_check
      _
    $region3: #{cnn_model1_forward.1} parent=1 // pred_check_branch
      %16 = sbr.rel (0) target = $region5
    $region4: #{cnn_model1_forward.1} parent=1 // pred_region
      _
    $region5: #{cnn_model1_forward.1} parent=1 // pred_fallthru
      _
    // Predicated region
    $region6: #{cnn_model1_forward.1} parent=1 // pred_check
      _
    $region7: #{cnn_model1_forward.1} parent=1 // pred_check_branch
      %18 = sbr.rel (0) target = $region9
    $region8: #{cnn_model1_forward.1} parent=1 // pred_region
      _
    $region9: #{cnn_model1_forward.1} parent=1 // pred_fallthru
      _
    // Predicated region
    $region10: #{cnn_model1_forward.1} parent=1 // pred_check
      _
    $region11: #{cnn_model1_forward.1} parent=1 // pred_check_branch
      %20 = sbr.rel (0) target = $region13
    $region12: #{cnn_model1_forward.1} parent=1 // pred_region
      _
    $region13: #{cnn_model1_forward.1} parent=1 // pred_fallthru
      _
    // Predicated region
    $region14: #{cnn_model1_forward.1} parent=1 // pred_check
      _
    $region15: #{cnn_model1_forward.1} parent=1 // pred_check_branch
      %22 = sbr.rel (0) target = $region17
    $region16: #{cnn_model1_forward.1} parent=1 // pred_region
      %s24 = ssub.s32 23040, 23040
      %25 = vsyncadd [#allocation3], %s24
      %s26 = sshll.u32 [#allocation2], 4
      %s27 = int_to_ptr.vmem [resolvable:$true] %s26
      %32 = dma.hbm_to_vmem [thread:$0]  %s3, 23040, %s27, [#allocation3], 320, 320, 20
    $region17: #{cnn_model1_forward.1} parent=1 // pred_fallthru
      _
    // Predicated region
    $region18: #{cnn_model1_forward.1} parent=1 // pred_check
      _
    $region19: #{cnn_model1_forward.1} parent=1 // pred_check_branch
      %34 = sbr.rel (0) target = $region21
    $region20: #{cnn_model1_forward.1} parent=1 // pred_region
      _
    $region21: #{cnn_model1_forward.1} parent=1 // pred_fallthru
      _
    // Predicated region
    $region22: #{cnn_model1_forward.1} parent=1 // pred_check
      _
    $region23: #{cnn_model1_forward.1} parent=1 // pred_check_branch
      %36 = sbr.rel (0) target = $region25
    $region24: #{cnn_model1_forward.1} parent=1 // pred_region
      _
    $region25: #{cnn_model1_forward.1} parent=1 // pred_fallthru
      _
    // Predicated region
    $region26: #{cnn_model1_forward.1} parent=1 // pred_check
      _
    $region27: #{cnn_model1_forward.1} parent=1 // pred_check_branch
      %38 = sbr.rel (0) target = $region29
    $region28: #{cnn_model1_forward.1} parent=1 // pred_region
      _
    $region29: #{cnn_model1_forward.1} parent=1 // pred_fallthru
      _
    // Predicated region
    $region30: #{cnn_model1_forward.1} parent=1 // pred_check
      _
    $region31: #{cnn_model1_forward.1} parent=1 // pred_check_branch
      %40 = sbr.rel (0) target = $region33
    $region32: #{cnn_model1_forward.1} parent=1 // pred_region
      _
    $region33: #{cnn_model1_forward.1} parent=1 // pred_fallthru
      _
    // Predicated region
    $region34: #{cnn_model1_forward.1} parent=1 // pred_check
      _
    $region35: #{cnn_model1_forward.1} parent=1 // pred_check_branch
      %42 = sbr.rel (0) target = $region37
    $region36: #{cnn_model1_forward.1} parent=1 // pred_region
      _
    $region37: #{cnn_model1_forward.1} parent=1 // pred_fallthru
      _
    // Predicated region
    $region38: #{cnn_model1_forward.1} parent=1 // pred_check
      _
    $region39: #{cnn_model1_forward.1} parent=1 // pred_check_branch
      %44 = sbr.rel (0) target = $region41
    $region40: #{cnn_model1_forward.1} parent=1 // pred_region
      %45 = dma.done [#allocation3], 23040
    $region41: #{cnn_model1_forward.1} parent=1 // pred_fallthru
      _
    %v47 = vld [vmem:[%s0] sm:$0xff]
    %v48 = vld [vmem:[%s0 + $0x8] sm:$0xff]
    %v49 = vld [vmem:[%s1] sm:$0xff]
    %v50 = vld [vmem:[%s1 + $0x8] sm:$0xff]
    %v51 = vld [vmem:[%s1 + $0x10] sm:$0xf]
    %v52 = vld [vmem:[%s1 + $0x14] sm:$0xff]
    %v53 = vld [vmem:[%s1 + $0x1c] sm:$0xff]
    %v54 = vld [vmem:[%s1 + $0x24] sm:$0xf]
    %v55 = vld [vmem:[%s1 + $0x28] sm:$0xff]
    %v56 = vld [vmem:[%s1 + $0x30] sm:$0xff]
    %v57 = vld [vmem:[%s1 + $0x38] sm:$0xf]
    %v58 = vld [vmem:[%s1 + $0x3c] sm:$0xff]
    %v59 = vld [vmem:[%s1 + $0x44] sm:$0xff]
    %v60 = vld [vmem:[%s1 + $0x4c] sm:$0xf]
    %v61 = vld [vmem:[%s1 + $0x50] sm:$0xff]
    %v62 = vld [vmem:[%s1 + $0x58] sm:$0xff]
    %v63 = vld [vmem:[%s1 + $0x60] sm:$0xf]
    %v64 = vld [vmem:[%s1 + $0x64] sm:$0xff]
    %v65 = vld [vmem:[%s1 + $0x6c] sm:$0xff]
    %v66 = vld [vmem:[%s1 + $0x74] sm:$0xf]
    %v67 = vld [vmem:[%s1 + $0x78] sm:$0xff]
    %v68 = vld [vmem:[%s1 + $0x80] sm:$0xff]
    %v69 = vld [vmem:[%s1 + $0x88] sm:$0xf]
    %v70 = vld [vmem:[%s1 + $0x8c] sm:$0xff]
    %v71 = vld [vmem:[%s1 + $0x94] sm:$0xff]
    %v72 = vld [vmem:[%s1 + $0x9c] sm:$0xf]
    %v73 = vld [vmem:[%s1 + $0xa0] sm:$0xff]
    %v74 = vld [vmem:[%s1 + $0xa8] sm:$0xff]
    %v75 = vld [vmem:[%s1 + $0xb0] sm:$0xf]
    %v76 = vld [vmem:[%s1 + $0xb4] sm:$0xff]
    %v77 = vld [vmem:[%s1 + $0xbc] sm:$0xff]
    %v78 = vld [vmem:[%s1 + $0xc4] sm:$0xf]
    %v79 = vld [vmem:[%s1 + $0xc8] sm:$0xff]
    %v80 = vld [vmem:[%s1 + $0xd0] sm:$0xff]
    %v81 = vld [vmem:[%s1 + $0xd8] sm:$0xf]
    %v82 = vld [vmem:[%s1 + $0xdc] sm:$0xff]
    %v83 = vld [vmem:[%s1 + $0xe4] sm:$0xff]
    %v84 = vld [vmem:[%s1 + $0xec] sm:$0xf]
    %v85 = vld [vmem:[%s1 + $0xf0] sm:$0xff]
    %v86 = vld [vmem:[%s1 + $0xf8] sm:$0xff]
    %v87 = vld [vmem:[%s1 + $0x100] sm:$0xf]
    %v88 = vld [vmem:[%s1 + $0x104] sm:$0xff]
    %v89 = vld [vmem:[%s1 + $0x10c] sm:$0xff]
    %v90 = vld [vmem:[%s1 + $0x114] sm:$0xf]
    %v91 = vld [vmem:[%s1 + $0x118] sm:$0xff]
    %v92 = vld [vmem:[%s1 + $0x120] sm:$0xff]
    %v93 = vld [vmem:[%s1 + $0x128] sm:$0xf]
    %v94 = vld [vmem:[%s1 + $0x12c] sm:$0xff]
    %v95 = vld [vmem:[%s1 + $0x134] sm:$0xff]
    %v96 = vld [vmem:[%s1 + $0x13c] sm:$0xf]
    %v97 = vld [vmem:[%s1 + $0x140] sm:$0xff]
    %v98 = vld [vmem:[%s1 + $0x148] sm:$0xff]
    %v99 = vld [vmem:[%s1 + $0x150] sm:$0xf]
    %v100 = vld [vmem:[%s1 + $0x154] sm:$0xff]
    %v101 = vld [vmem:[%s1 + $0x15c] sm:$0xff]
    %v102 = vld [vmem:[%s1 + $0x164] sm:$0xf]
    %v103 = vld [vmem:[%s1 + $0x168] sm:$0xff]
    %v104 = vld [vmem:[%s1 + $0x170] sm:$0xff]
    %v105 = vld [vmem:[%s1 + $0x178] sm:$0xf]
    %v106 = vld [vmem:[%s1 + $0x17c] sm:$0xff]
    %v107 = vld [vmem:[%s1 + $0x184] sm:$0xff]
    %v108 = vld [vmem:[%s1 + $0x18c] sm:$0xf]
    %v109 = vld [vmem:[%s1 + $0x190] sm:$0xff]
    %v110 = vld [vmem:[%s1 + $0x198] sm:$0xff]
    %v111 = vld [vmem:[%s1 + $0x1a0] sm:$0xf]
    %v112 = vld [vmem:[%s1 + $0x1a4] sm:$0xff]
    %v113 = vld [vmem:[%s1 + $0x1ac] sm:$0xff]
    %v114 = vld [vmem:[%s1 + $0x1b4] sm:$0xf]
    %v115 = vld [vmem:[%s1 + $0x1b8] sm:$0xff]
    %v116 = vld [vmem:[%s1 + $0x1c0] sm:$0xff]
    %v117 = vld [vmem:[%s1 + $0x1c8] sm:$0xf]
    %v118 = vld [vmem:[%s1 + $0x1cc] sm:$0xff]
    %v119 = vld [vmem:[%s1 + $0x1d4] sm:$0xff]
    %v120 = vld [vmem:[%s1 + $0x1dc] sm:$0xf]
    %v121 = vld [vmem:[%s1 + $0x1e0] sm:$0xff]
    %v122 = vld [vmem:[%s1 + $0x1e8] sm:$0xff]
    %v123 = vld [vmem:[%s1 + $0x1f0] sm:$0xf]
    %v124 = vld [vmem:[%s1 + $0x1f4] sm:$0xff]
    %v125 = vld [vmem:[%s1 + $0x1fc] sm:$0xff]
    %v126 = vld [vmem:[%s1 + $0x204] sm:$0xf]
    %v127 = vld [vmem:[%s1 + $0x208] sm:$0xff]
    %v128 = vld [vmem:[%s1 + $0x210] sm:$0xff]
    %v129 = vld [vmem:[%s1 + $0x218] sm:$0xf]
    %v130 = vld [vmem:[%s1 + $0x21c] sm:$0xff]
    %v131 = vld [vmem:[%s1 + $0x224] sm:$0xff]
    %v132 = vld [vmem:[%s1 + $0x22c] sm:$0xf]
    %v133 = vld [vmem:[%s1 + $0x230] sm:$0xff]
    %v134 = vld [vmem:[%s1 + $0x238] sm:$0xff]
    %v135 = vld [vmem:[%s1 + $0x240] sm:$0xf]
    %v136 = vld [vmem:[%s1 + $0x244] sm:$0xff]
    %v137 = vld [vmem:[%s1 + $0x24c] sm:$0xff]
    %v138 = vld [vmem:[%s1 + $0x254] sm:$0xf]
    %v139 = vld [vmem:[%s1 + $0x258] sm:$0xff]
    %v140 = vld [vmem:[%s1 + $0x260] sm:$0xff]
    %v141 = vld [vmem:[%s1 + $0x268] sm:$0xf]
    %v142 = vld [vmem:[%s1 + $0x26c] sm:$0xff]
    %v143 = vld [vmem:[%s1 + $0x274] sm:$0xff]
    %v144 = vld [vmem:[%s1 + $0x27c] sm:$0xf]
    %v145 = vld [vmem:[%s1 + $0x280] sm:$0xff]
    %v146 = vld [vmem:[%s1 + $0x288] sm:$0xff]
    %v147 = vld [vmem:[%s1 + $0x290] sm:$0xf]
    %v148 = vld [vmem:[%s1 + $0x294] sm:$0xff]
    %v149 = vld [vmem:[%s1 + $0x29c] sm:$0xff]
    %v150 = vld [vmem:[%s1 + $0x2a4] sm:$0xf]
    %v151 = vld [vmem:[%s1 + $0x2a8] sm:$0xff]
    %v152 = vld [vmem:[%s1 + $0x2b0] sm:$0xff]
    %v153 = vld [vmem:[%s1 + $0x2b8] sm:$0xf]
    %v154 = vld [vmem:[%s1 + $0x2bc] sm:$0xff]
    %v155 = vld [vmem:[%s1 + $0x2c4] sm:$0xff]
    %v156 = vld [vmem:[%s1 + $0x2cc] sm:$0xf]
    %v157 = vld [vmem:[%s1 + $0x2d0] sm:$0xff]
    %v158 = vld [vmem:[%s1 + $0x2d8] sm:$0xff]
    %v159 = vld [vmem:[%s1 + $0x2e0] sm:$0xf]
    %v160 = vld [vmem:[%s1 + $0x2e4] sm:$0xff]
    %v161 = vld [vmem:[%s1 + $0x2ec] sm:$0xff]
    %v162 = vld [vmem:[%s1 + $0x2f4] sm:$0xf]
    %v163 = vld [vmem:[%s1 + $0x2f8] sm:$0xff]
    %v164 = vld [vmem:[%s1 + $0x300] sm:$0xff]
    %v165 = vld [vmem:[%s1 + $0x308] sm:$0xf]
    %v166 = vld [vmem:[%s1 + $0x30c] sm:$0xff]
    %v167 = vld [vmem:[%s1 + $0x314] sm:$0xff]
    %v168 = vld [vmem:[%s1 + $0x31c] sm:$0xf]
    %v169 = vld [vmem:[%s1 + $0x320] sm:$0xff]
    %v170 = vld [vmem:[%s1 + $0x328] sm:$0xff]
    %v171 = vld [vmem:[%s1 + $0x330] sm:$0xf]
    %v172 = vld [vmem:[%s1 + $0x334] sm:$0xff]
    %v173 = vld [vmem:[%s1 + $0x33c] sm:$0xff]
    %v174 = vld [vmem:[%s1 + $0x344] sm:$0xf]
    %v175 = vld [vmem:[%s1 + $0x348] sm:$0xff]
    %v176 = vld [vmem:[%s1 + $0x350] sm:$0xff]
    %v177 = vld [vmem:[%s1 + $0x358] sm:$0xf]
    %v178 = vld [vmem:[%s1 + $0x35c] sm:$0xff]
    %v179 = vld [vmem:[%s1 + $0x364] sm:$0xff]
    %v180 = vld [vmem:[%s1 + $0x36c] sm:$0xf]
    %v181 = vld [vmem:[%s1 + $0x370] sm:$0xff]
    %v182 = vld [vmem:[%s1 + $0x378] sm:$0xff]
    %v183 = vld [vmem:[%s1 + $0x380] sm:$0xf]
    %v184 = vld [vmem:[%s1 + $0x384] sm:$0xff]
    %v185 = vld [vmem:[%s1 + $0x38c] sm:$0xff]
    %v186 = vld [vmem:[%s1 + $0x394] sm:$0xf]
    %v187 = vld [vmem:[%s1 + $0x398] sm:$0xff]
    %v188 = vld [vmem:[%s1 + $0x3a0] sm:$0xff]
    %v189 = vld [vmem:[%s1 + $0x3a8] sm:$0xf]
    %v190 = vld [vmem:[%s1 + $0x3ac] sm:$0xff]
    %v191 = vld [vmem:[%s1 + $0x3b4] sm:$0xff]
    %v192 = vld [vmem:[%s1 + $0x3bc] sm:$0xf]
    %v193 = vld [vmem:[%s1 + $0x3c0] sm:$0xff]
    %v194 = vld [vmem:[%s1 + $0x3c8] sm:$0xff]
    %v195 = vld [vmem:[%s1 + $0x3d0] sm:$0xf]
    %v196 = vld [vmem:[%s2] sm:$0x1f]
    %v198 = vlaneseq
    %v199 = vshrl.u32 %v198, 7
    %v200 = vsub.s32 0, %v199
    %v201 = vrot.slane %v196, %v200
    %v202 = vlaneseq
    %v203 = vshrl.u32 %v202, 7
    %v204 = vsub.s32 1, %v203
    %v205 = vrot.slane %v196, %v204
    %v206 = vlaneseq
    %v207 = vshrl.u32 %v206, 7
    %v208 = vsub.s32 2, %v207
    %v209 = vrot.slane %v196, %v208
    %v210 = vlaneseq
    %v211 = vshrl.u32 %v210, 7
    %v212 = vsub.s32 3, %v211
    %v213 = vrot.slane %v196, %v212
    %v214 = vlaneseq
    %v215 = vshrl.u32 %v214, 7
    %v216 = vsub.s32 4, %v215
    %v217 = vrot.slane %v196, %v216
    %v225 = vunpack.c.l.b16 %v47
    %v226 = vunpack.c.h.b16 %v47
    %v227 = vunpack.c.l.b16 %v48
    %v228 = vunpack.c.h.b16 %v48
    %v229 = vpack.c.b16 %v225, %v225
    %v230 = vpack.c.b16 %v226, %v226
    %v231 = vpack.c.b16 %v227, %v227
    %v232 = vpack.c.b16 %v228, %v228
    %v383 = vunpack.c.l.b16 %v49
    %v384 = vunpack.c.h.b16 %v49
    %v385 = vunpack.c.l.b16 %v50
    %v386 = vunpack.c.h.b16 %v50
    %v387 = vunpack.c.l.b16 %v51
    %v388 = vunpack.c.l.b16 %v52
    %v389 = vunpack.c.h.b16 %v52
    %v390 = vunpack.c.l.b16 %v53
    %v391 = vunpack.c.h.b16 %v53
    %v392 = vunpack.c.l.b16 %v54
    %v393 = vunpack.c.l.b16 %v55
    %v394 = vunpack.c.h.b16 %v55
    %v395 = vunpack.c.l.b16 %v56
    %v396 = vunpack.c.h.b16 %v56
    %v397 = vunpack.c.l.b16 %v57
    %v398 = vunpack.c.l.b16 %v58
    %v399 = vunpack.c.h.b16 %v58
    %v400 = vunpack.c.l.b16 %v59
    %v401 = vunpack.c.h.b16 %v59
    %v402 = vunpack.c.l.b16 %v60
    %v403 = vunpack.c.l.b16 %v61
    %v404 = vunpack.c.h.b16 %v61
    %v405 = vunpack.c.l.b16 %v62
    %v406 = vunpack.c.h.b16 %v62
    %v407 = vunpack.c.l.b16 %v63
    %v408 = vunpack.c.l.b16 %v64
    %v409 = vunpack.c.h.b16 %v64
    %v410 = vunpack.c.l.b16 %v65
    %v411 = vunpack.c.h.b16 %v65
    %v412 = vunpack.c.l.b16 %v66
    %v413 = vunpack.c.l.b16 %v67
    %v414 = vunpack.c.h.b16 %v67
    %v415 = vunpack.c.l.b16 %v68
    %v416 = vunpack.c.h.b16 %v68
    %v417 = vunpack.c.l.b16 %v69
    %v418 = vunpack.c.l.b16 %v70
    %v419 = vunpack.c.h.b16 %v70
    %v420 = vunpack.c.l.b16 %v71
    %v421 = vunpack.c.h.b16 %v71
    %v422 = vunpack.c.l.b16 %v72
    %v423 = vunpack.c.l.b16 %v73
    %v424 = vunpack.c.h.b16 %v73
    %v425 = vunpack.c.l.b16 %v74
    %v426 = vunpack.c.h.b16 %v74
    %v427 = vunpack.c.l.b16 %v75
    %v428 = vunpack.c.l.b16 %v76
    %v429 = vunpack.c.h.b16 %v76
    %v430 = vunpack.c.l.b16 %v77
    %v431 = vunpack.c.h.b16 %v77
    %v432 = vunpack.c.l.b16 %v78
    %v433 = vunpack.c.l.b16 %v79
    %v434 = vunpack.c.h.b16 %v79
    %v435 = vunpack.c.l.b16 %v80
    %v436 = vunpack.c.h.b16 %v80
    %v437 = vunpack.c.l.b16 %v81
    %v438 = vunpack.c.l.b16 %v82
    %v439 = vunpack.c.h.b16 %v82
    %v440 = vunpack.c.l.b16 %v83
    %v441 = vunpack.c.h.b16 %v83
    %v442 = vunpack.c.l.b16 %v84
    %v443 = vunpack.c.l.b16 %v85
    %v444 = vunpack.c.h.b16 %v85
    %v445 = vunpack.c.l.b16 %v86
    %v446 = vunpack.c.h.b16 %v86
    %v447 = vunpack.c.l.b16 %v87
    %v448 = vunpack.c.l.b16 %v88
    %v449 = vunpack.c.h.b16 %v88
    %v450 = vunpack.c.l.b16 %v89
    %v451 = vunpack.c.h.b16 %v89
    %v452 = vunpack.c.l.b16 %v90
    %v453 = vunpack.c.l.b16 %v91
    %v454 = vunpack.c.h.b16 %v91
    %v455 = vunpack.c.l.b16 %v92
    %v456 = vunpack.c.h.b16 %v92
    %v457 = vunpack.c.l.b16 %v93
    %v458 = vunpack.c.l.b16 %v94
    %v459 = vunpack.c.h.b16 %v94
    %v460 = vunpack.c.l.b16 %v95
    %v461 = vunpack.c.h.b16 %v95
    %v462 = vunpack.c.l.b16 %v96
    %v463 = vunpack.c.l.b16 %v97
    %v464 = vunpack.c.h.b16 %v97
    %v465 = vunpack.c.l.b16 %v98
    %v466 = vunpack.c.h.b16 %v98
    %v467 = vunpack.c.l.b16 %v99
    %v468 = vunpack.c.l.b16 %v100
    %v469 = vunpack.c.h.b16 %v100
    %v470 = vunpack.c.l.b16 %v101
    %v471 = vunpack.c.h.b16 %v101
    %v472 = vunpack.c.l.b16 %v102
    %v473 = vunpack.c.l.b16 %v103
    %v474 = vunpack.c.h.b16 %v103
    %v475 = vunpack.c.l.b16 %v104
    %v476 = vunpack.c.h.b16 %v104
    %v477 = vunpack.c.l.b16 %v105
    %v478 = vunpack.c.l.b16 %v106
    %v479 = vunpack.c.h.b16 %v106
    %v480 = vunpack.c.l.b16 %v107
    %v481 = vunpack.c.h.b16 %v107
    %v482 = vunpack.c.l.b16 %v108
    %v483 = vunpack.c.l.b16 %v109
    %v484 = vunpack.c.h.b16 %v109
    %v485 = vunpack.c.l.b16 %v110
    %v486 = vunpack.c.h.b16 %v110
    %v487 = vunpack.c.l.b16 %v111
    %v488 = vunpack.c.l.b16 %v112
    %v489 = vunpack.c.h.b16 %v112
    %v490 = vunpack.c.l.b16 %v113
    %v491 = vunpack.c.h.b16 %v113
    %v492 = vunpack.c.l.b16 %v114
    %v493 = vunpack.c.l.b16 %v115
    %v494 = vunpack.c.h.b16 %v115
    %v495 = vunpack.c.l.b16 %v116
    %v496 = vunpack.c.h.b16 %v116
    %v497 = vunpack.c.l.b16 %v117
    %v498 = vunpack.c.l.b16 %v118
    %v499 = vunpack.c.h.b16 %v118
    %v500 = vunpack.c.l.b16 %v119
    %v501 = vunpack.c.h.b16 %v119
    %v502 = vunpack.c.l.b16 %v120
    %v503 = vunpack.c.l.b16 %v121
    %v504 = vunpack.c.h.b16 %v121
    %v505 = vunpack.c.l.b16 %v122
    %v506 = vunpack.c.h.b16 %v122
    %v507 = vunpack.c.l.b16 %v123
    %v508 = vunpack.c.l.b16 %v124
    %v509 = vunpack.c.h.b16 %v124
    %v510 = vunpack.c.l.b16 %v125
    %v511 = vunpack.c.h.b16 %v125
    %v512 = vunpack.c.l.b16 %v126
    %v513 = vunpack.c.l.b16 %v127
    %v514 = vunpack.c.h.b16 %v127
    %v515 = vunpack.c.l.b16 %v128
    %v516 = vunpack.c.h.b16 %v128
    %v517 = vunpack.c.l.b16 %v129
    %v518 = vunpack.c.l.b16 %v130
    %v519 = vunpack.c.h.b16 %v130
    %v520 = vunpack.c.l.b16 %v131
    %v521 = vunpack.c.h.b16 %v131
    %v522 = vunpack.c.l.b16 %v132
    %v523 = vunpack.c.l.b16 %v133
    %v524 = vunpack.c.h.b16 %v133
    %v525 = vunpack.c.l.b16 %v134
    %v526 = vunpack.c.h.b16 %v134
    %v527 = vunpack.c.l.b16 %v135
    %v528 = vunpack.c.l.b16 %v136
    %v529 = vunpack.c.h.b16 %v136
    %v530 = vunpack.c.l.b16 %v137
    %v531 = vunpack.c.h.b16 %v137
    %v532 = vunpack.c.l.b16 %v138
    %v533 = vunpack.c.l.b16 %v139
    %v534 = vunpack.c.h.b16 %v139
    %v535 = vunpack.c.l.b16 %v140
    %v536 = vunpack.c.h.b16 %v140
    %v537 = vunpack.c.l.b16 %v141
    %v538 = vunpack.c.l.b16 %v142
    %v539 = vunpack.c.h.b16 %v142
    %v540 = vunpack.c.l.b16 %v143
    %v541 = vunpack.c.h.b16 %v143
    %v542 = vunpack.c.l.b16 %v144
    %v543 = vunpack.c.l.b16 %v145
    %v544 = vunpack.c.h.b16 %v145
    %v545 = vunpack.c.l.b16 %v146
    %v546 = vunpack.c.h.b16 %v146
    %v547 = vunpack.c.l.b16 %v147
    %v548 = vunpack.c.l.b16 %v148
    %v549 = vunpack.c.h.b16 %v148
    %v550 = vunpack.c.l.b16 %v149
    %v551 = vunpack.c.h.b16 %v149
    %v552 = vunpack.c.l.b16 %v150
    %v553 = vunpack.c.l.b16 %v151
    %v554 = vunpack.c.h.b16 %v151
    %v555 = vunpack.c.l.b16 %v152
    %v556 = vunpack.c.h.b16 %v152
    %v557 = vunpack.c.l.b16 %v153
    %v558 = vunpack.c.l.b16 %v154
    %v559 = vunpack.c.h.b16 %v154
    %v560 = vunpack.c.l.b16 %v155
    %v561 = vunpack.c.h.b16 %v155
    %v562 = vunpack.c.l.b16 %v156
    %v563 = vunpack.c.l.b16 %v157
    %v564 = vunpack.c.h.b16 %v157
    %v565 = vunpack.c.l.b16 %v158
    %v566 = vunpack.c.h.b16 %v158
    %v567 = vunpack.c.l.b16 %v159
    %v568 = vunpack.c.l.b16 %v160
    %v569 = vunpack.c.h.b16 %v160
    %v570 = vunpack.c.l.b16 %v161
    %v571 = vunpack.c.h.b16 %v161
    %v572 = vunpack.c.l.b16 %v162
    %v573 = vunpack.c.l.b16 %v163
    %v574 = vunpack.c.h.b16 %v163
    %v575 = vunpack.c.l.b16 %v164
    %v576 = vunpack.c.h.b16 %v164
    %v577 = vunpack.c.l.b16 %v165
    %v578 = vunpack.c.l.b16 %v166
    %v579 = vunpack.c.h.b16 %v166
    %v580 = vunpack.c.l.b16 %v167
    %v581 = vunpack.c.h.b16 %v167
    %v582 = vunpack.c.l.b16 %v168
    %v583 = vunpack.c.l.b16 %v169
    %v584 = vunpack.c.h.b16 %v169
    %v585 = vunpack.c.l.b16 %v170
    %v586 = vunpack.c.h.b16 %v170
    %v587 = vunpack.c.l.b16 %v171
    %v588 = vunpack.c.l.b16 %v172
    %v589 = vunpack.c.h.b16 %v172
    %v590 = vunpack.c.l.b16 %v173
    %v591 = vunpack.c.h.b16 %v173
    %v592 = vunpack.c.l.b16 %v174
    %v593 = vunpack.c.l.b16 %v175
    %v594 = vunpack.c.h.b16 %v175
    %v595 = vunpack.c.l.b16 %v176
    %v596 = vunpack.c.h.b16 %v176
    %v597 = vunpack.c.l.b16 %v177
    %v598 = vunpack.c.l.b16 %v178
    %v599 = vunpack.c.h.b16 %v178
    %v600 = vunpack.c.l.b16 %v179
    %v601 = vunpack.c.h.b16 %v179
    %v602 = vunpack.c.l.b16 %v180
    %v603 = vunpack.c.l.b16 %v181
    %v604 = vunpack.c.h.b16 %v181
    %v605 = vunpack.c.l.b16 %v182
    %v606 = vunpack.c.h.b16 %v182
    %v607 = vunpack.c.l.b16 %v183
    %v608 = vunpack.c.l.b16 %v184
    %v609 = vunpack.c.h.b16 %v184
    %v610 = vunpack.c.l.b16 %v185
    %v611 = vunpack.c.h.b16 %v185
    %v612 = vunpack.c.l.b16 %v186
    %v613 = vunpack.c.l.b16 %v187
    %v614 = vunpack.c.h.b16 %v187
    %v615 = vunpack.c.l.b16 %v188
    %v616 = vunpack.c.h.b16 %v188
    %v617 = vunpack.c.l.b16 %v189
    %v618 = vunpack.c.l.b16 %v190
    %v619 = vunpack.c.h.b16 %v190
    %v620 = vunpack.c.l.b16 %v191
    %v621 = vunpack.c.h.b16 %v191
    %v622 = vunpack.c.l.b16 %v192
    %v623 = vunpack.c.l.b16 %v193
    %v624 = vunpack.c.h.b16 %v193
    %v625 = vunpack.c.l.b16 %v194
    %v626 = vunpack.c.h.b16 %v194
    %v627 = vunpack.c.l.b16 %v195
    %v628 = vpack.c.b16 %v388, %v383
    %v629 = vpack.c.b16 %v389, %v384
    %v630 = vpack.c.b16 %v390, %v385
    %v631 = vpack.c.b16 %v391, %v386
    %v632 = vpack.c.b16 %v392, %v387
    %v633 = vpack.c.b16 %v398, %v393
    %v634 = vpack.c.b16 %v399, %v394
    %v635 = vpack.c.b16 %v400, %v395
    %v636 = vpack.c.b16 %v401, %v396
    %v637 = vpack.c.b16 %v402, %v397
    %v638 = vpack.c.b16 %v408, %v403
    %v639 = vpack.c.b16 %v409, %v404
    %v640 = vpack.c.b16 %v410, %v405
    %v641 = vpack.c.b16 %v411, %v406
    %v642 = vpack.c.b16 %v412, %v407
    %v643 = vpack.c.b16 %v418, %v413
    %v644 = vpack.c.b16 %v419, %v414
    %v645 = vpack.c.b16 %v420, %v415
    %v646 = vpack.c.b16 %v421, %v416
    %v647 = vpack.c.b16 %v422, %v417
    %v648 = vpack.c.b16 %v428, %v423
    %v649 = vpack.c.b16 %v429, %v424
    %v650 = vpack.c.b16 %v430, %v425
    %v651 = vpack.c.b16 %v431, %v426
    %v652 = vpack.c.b16 %v432, %v427
    %v653 = vpack.c.b16 %v438, %v433
    %v654 = vpack.c.b16 %v439, %v434
    %v655 = vpack.c.b16 %v440, %v435
    %v656 = vpack.c.b16 %v441, %v436
    %v657 = vpack.c.b16 %v442, %v437
    %v658 = vpack.c.b16 %v448, %v443
    %v659 = vpack.c.b16 %v449, %v444
    %v660 = vpack.c.b16 %v450, %v445
    %v661 = vpack.c.b16 %v451, %v446
    %v662 = vpack.c.b16 %v452, %v447
    %v663 = vpack.c.b16 %v458, %v453
    %v664 = vpack.c.b16 %v459, %v454
    %v665 = vpack.c.b16 %v460, %v455
    %v666 = vpack.c.b16 %v461, %v456
    %v667 = vpack.c.b16 %v462, %v457
    %v668 = vpack.c.b16 %v468, %v463
    %v669 = vpack.c.b16 %v469, %v464
    %v670 = vpack.c.b16 %v470, %v465
    %v671 = vpack.c.b16 %v471, %v466
    %v672 = vpack.c.b16 %v472, %v467
    %v673 = vpack.c.b16 %v478, %v473
    %v674 = vpack.c.b16 %v479, %v474
    %v675 = vpack.c.b16 %v480, %v475
    %v676 = vpack.c.b16 %v481, %v476
    %v677 = vpack.c.b16 %v482, %v477
    %v678 = vpack.c.b16 %v488, %v483
    %v679 = vpack.c.b16 %v489, %v484
    %v680 = vpack.c.b16 %v490, %v485
    %v681 = vpack.c.b16 %v491, %v486
    %v682 = vpack.c.b16 %v492, %v487
    %v683 = vpack.c.b16 %v498, %v493
    %v684 = vpack.c.b16 %v499, %v494
    %v685 = vpack.c.b16 %v500, %v495
    %v686 = vpack.c.b16 %v501, %v496
    %v687 = vpack.c.b16 %v502, %v497
    %v688 = vpack.c.b16 %v508, %v503
    %v689 = vpack.c.b16 %v509, %v504
    %v690 = vpack.c.b16 %v510, %v505
    %v691 = vpack.c.b16 %v511, %v506
    %v692 = vpack.c.b16 %v512, %v507
    %v693 = vpack.c.b16 %v518, %v513
    %v694 = vpack.c.b16 %v519, %v514
    %v695 = vpack.c.b16 %v520, %v515
    %v696 = vpack.c.b16 %v521, %v516
    %v697 = vpack.c.b16 %v522, %v517
    %v698 = vpack.c.b16 %v528, %v523
    %v699 = vpack.c.b16 %v529, %v524
    %v700 = vpack.c.b16 %v530, %v525
    %v701 = vpack.c.b16 %v531, %v526
    %v702 = vpack.c.b16 %v532, %v527
    %v703 = vpack.c.b16 %v538, %v533
    %v704 = vpack.c.b16 %v539, %v534
    %v705 = vpack.c.b16 %v540, %v535
    %v706 = vpack.c.b16 %v541, %v536
    %v707 = vpack.c.b16 %v542, %v537
    %v708 = vpack.c.b16 %v548, %v543
    %v709 = vpack.c.b16 %v549, %v544
    %v710 = vpack.c.b16 %v550, %v545
    %v711 = vpack.c.b16 %v551, %v546
    %v712 = vpack.c.b16 %v552, %v547
    %v713 = vpack.c.b16 %v558, %v553
    %v714 = vpack.c.b16 %v559, %v554
    %v715 = vpack.c.b16 %v560, %v555
    %v716 = vpack.c.b16 %v561, %v556
    %v717 = vpack.c.b16 %v562, %v557
    %v718 = vpack.c.b16 %v568, %v563
    %v719 = vpack.c.b16 %v569, %v564
    %v720 = vpack.c.b16 %v570, %v565
    %v721 = vpack.c.b16 %v571, %v566
    %v722 = vpack.c.b16 %v572, %v567
    %v723 = vpack.c.b16 %v578, %v573
    %v724 = vpack.c.b16 %v579, %v574
    %v725 = vpack.c.b16 %v580, %v575
    %v726 = vpack.c.b16 %v581, %v576
    %v727 = vpack.c.b16 %v582, %v577
    %v728 = vpack.c.b16 %v588, %v583
    %v729 = vpack.c.b16 %v589, %v584
    %v730 = vpack.c.b16 %v590, %v585
    %v731 = vpack.c.b16 %v591, %v586
    %v732 = vpack.c.b16 %v592, %v587
    %v733 = vpack.c.b16 %v598, %v593
    %v734 = vpack.c.b16 %v599, %v594
    %v735 = vpack.c.b16 %v600, %v595
    %v736 = vpack.c.b16 %v601, %v596
    %v737 = vpack.c.b16 %v602, %v597
    %v738 = vpack.c.b16 %v608, %v603
    %v739 = vpack.c.b16 %v609, %v604
    %v740 = vpack.c.b16 %v610, %v605
    %v741 = vpack.c.b16 %v611, %v606
    %v742 = vpack.c.b16 %v612, %v607
    %v743 = vpack.c.b16 %v618, %v613
    %v744 = vpack.c.b16 %v619, %v614
    %v745 = vpack.c.b16 %v620, %v615
    %v746 = vpack.c.b16 %v621, %v616
    %v747 = vpack.c.b16 %v622, %v617
    %v748 = vpack.c.b16 %v623, %v623
    %v749 = vpack.c.b16 %v624, %v624
    %v750 = vpack.c.b16 %v625, %v625
    %v751 = vpack.c.b16 %v626, %v626
    %v752 = vpack.c.b16 %v627, %v627
    %vm873 = vcmask 64512
    %v875 = vsel %vm873, %v232, 0
    %vm877 = vcmask 1043456
    %v879 = vsel %vm877, %v748, 0
    %v882 = vsel %vm877, %v749, 0
    %v885 = vsel %vm877, %v750, 0
    %v888 = vsel %vm877, %v751, 0
    %v891 = vsel %vm877, %v752, 0
    %893 = vmatprep.subr.bf16.mxu0 %v629
    %894 = vmatpush1.bf16.msra.mxu0 %v628
    %895 = vmatprep.subr.bf16.mxu0 %v634
    %896 = vmatpush1.bf16.msra.mxu0 %v633
    %897 = vmatprep.subr.bf16.mxu0 %v639
    %898 = vmatpush1.bf16.msra.mxu0 %v638
    %899 = vmatprep.subr.bf16.mxu0 %v644
    %900 = vmatpush1.bf16.msra.mxu0 %v643
    %901 = vmatprep.subr.bf16.mxu0 %v649
    %902 = vmatpush1.bf16.msra.mxu0 %v648
    %903 = vmatprep.subr.bf16.mxu0 %v654
    %904 = vmatpush1.bf16.msra.mxu0 %v653
    %905 = vmatprep.subr.bf16.mxu0 %v659
    %906 = vmatpush1.bf16.msra.mxu0 %v658
    %907 = vmatprep.subr.bf16.mxu0 %v664
    %908 = vmatpush1.bf16.msra.mxu0 %v663
    %909 = vmatprep.subr.bf16.mxu0 %v669
    %910 = vmatpush1.bf16.msra.mxu0 %v668
    %911 = vmatprep.subr.bf16.mxu0 %v674
    %912 = vmatpush1.bf16.msra.mxu0 %v673
    %913 = vmatprep.subr.bf16.mxu0 %v679
    %914 = vmatpush1.bf16.msra.mxu0 %v678
    %915 = vmatprep.subr.bf16.mxu0 %v684
    %916 = vmatpush1.bf16.msra.mxu0 %v683
    %917 = vmatprep.subr.bf16.mxu0 %v689
    %918 = vmatpush1.bf16.msra.mxu0 %v688
    %919 = vmatprep.subr.bf16.mxu0 %v694
    %920 = vmatpush1.bf16.msra.mxu0 %v693
    %921 = vmatprep.subr.bf16.mxu0 %v699
    %922 = vmatpush1.bf16.msra.mxu0 %v698
    %923 = vmatprep.subr.bf16.mxu0 %v704
    %924 = vmatpush1.bf16.msra.mxu0 %v703
    %925 = vmatprep.mubr.bf16.mxu0 %v230
    %926 = vmatmul.mubr.bf16.gmra.mrb[0].mxu0 %v229
    %v927 = vpop.f32.mrb[0].mxu0
    %v928 = vadd.f32 %v201, %v927
    %v929 = vpop.f32.mrb[0].mxu0
    %v930 = vadd.f32 %v205, %v929
    %v931 = vpop.f32.mrb[0].mxu0
    %v932 = vpop.f32.mrb[0].mxu0
    %933 = vdwg.mxu0
    %934 = vmatprep.subr.bf16.mxu0 %v709
    %935 = vmatpush1.bf16.msra.mxu0 %v708
    %936 = vmatprep.subr.bf16.mxu0 %v714
    %937 = vmatpush1.bf16.msra.mxu0 %v713
    %938 = vmatprep.subr.bf16.mxu0 %v719
    %939 = vmatpush1.bf16.msra.mxu0 %v718
    %940 = vmatprep.subr.bf16.mxu0 %v724
    %941 = vmatpush1.bf16.msra.mxu0 %v723
    %942 = vmatprep.subr.bf16.mxu0 %v729
    %943 = vmatpush1.bf16.msra.mxu0 %v728
    %944 = vmatprep.subr.bf16.mxu0 %v734
    %945 = vmatpush1.bf16.msra.mxu0 %v733
    %946 = vmatprep.subr.bf16.mxu0 %v739
    %947 = vmatpush1.bf16.msra.mxu0 %v738
    %948 = vmatprep.subr.bf16.mxu0 %v744
    %949 = vmatpush1.bf16.msra.mxu0 %v743
    %950 = vmatprep.subr.bf16.mxu0 %v882
    %951 = vmatpush1.bf16.msra.mxu0 %v879
    %952 = vmatprep.subr.bf16.mxu0 0
    %953 = vmatpush1.bf16.msra.mxu0 0
    %954 = vmatprep.subr.bf16.mxu0 0
    %955 = vmatpush1.bf16.msra.mxu0 0
    %956 = vmatprep.subr.bf16.mxu0 0
    %957 = vmatpush1.bf16.msra.mxu0 0
    %958 = vmatprep.subr.bf16.mxu0 0
    %959 = vmatpush1.bf16.msra.mxu0 0
    %960 = vmatprep.subr.bf16.mxu0 0
    %961 = vmatpush1.bf16.msra.mxu0 0
    %962 = vmatprep.subr.bf16.mxu0 0
    %963 = vmatpush1.bf16.msra.mxu0 0
    %964 = vmatprep.subr.bf16.mxu0 0
    %965 = vmatpush1.bf16.msra.mxu0 0
    %966 = vmatprep.mubr.bf16.mxu0 %v875
    %967 = vmatmul.mubr.bf16.gmra.mrb[0].mxu0 %v231
    %v968 = vpop.f32.mrb[0].mxu0
    %v969 = vadd.f32 %v928, %v968
    %v970 = vpop.f32.mrb[0].mxu0
    %v971 = vadd.f32 %v930, %v970
    %v972 = vpop.f32.mrb[0].mxu0
    %v973 = vpop.f32.mrb[0].mxu0
    %974 = vdwg.mxu0
    %975 = vmatprep.subr.bf16.mxu0 %v631
    %976 = vmatpush1.bf16.msra.mxu0 %v630
    %977 = vmatprep.subr.bf16.mxu0 %v636
    %978 = vmatpush1.bf16.msra.mxu0 %v635
    %979 = vmatprep.subr.bf16.mxu0 %v641
    %980 = vmatpush1.bf16.msra.mxu0 %v640
    %981 = vmatprep.subr.bf16.mxu0 %v646
    %982 = vmatpush1.bf16.msra.mxu0 %v645
    %983 = vmatprep.subr.bf16.mxu0 %v651
    %984 = vmatpush1.bf16.msra.mxu0 %v650
    %985 = vmatprep.subr.bf16.mxu0 %v656
    %986 = vmatpush1.bf16.msra.mxu0 %v655
    %987 = vmatprep.subr.bf16.mxu0 %v661
    %988 = vmatpush1.bf16.msra.mxu0 %v660
    %989 = vmatprep.subr.bf16.mxu0 %v666
    %990 = vmatpush1.bf16.msra.mxu0 %v665
    %991 = vmatprep.subr.bf16.mxu0 %v671
    %992 = vmatpush1.bf16.msra.mxu0 %v670
    %993 = vmatprep.subr.bf16.mxu0 %v676
    %994 = vmatpush1.bf16.msra.mxu0 %v675
    %995 = vmatprep.subr.bf16.mxu0 %v681
    %996 = vmatpush1.bf16.msra.mxu0 %v680
    %997 = vmatprep.subr.bf16.mxu0 %v686
    %998 = vmatpush1.bf16.msra.mxu0 %v685
    %999 = vmatprep.subr.bf16.mxu0 %v691
    %1000 = vmatpush1.bf16.msra.mxu0 %v690
    %1001 = vmatprep.subr.bf16.mxu0 %v696
    %1002 = vmatpush1.bf16.msra.mxu0 %v695
    %1003 = vmatprep.subr.bf16.mxu0 %v701
    %1004 = vmatpush1.bf16.msra.mxu0 %v700
    %1005 = vmatprep.subr.bf16.mxu0 %v706
    %1006 = vmatpush1.bf16.msra.mxu0 %v705
    %1007 = vmatprep.mubr.bf16.mxu0 %v230
    %1008 = vmatmul.mubr.bf16.gmra.mrb[0].mxu0 %v229
    %v1009 = vpop.f32.mrb[0].mxu0
    %v1010 = vadd.f32 %v209, %v1009
    %v1011 = vpop.f32.mrb[0].mxu0
    %v1012 = vadd.f32 %v213, %v1011
    %v1013 = vpop.f32.mrb[0].mxu0
    %v1014 = vpop.f32.mrb[0].mxu0
    %1015 = vdwg.mxu0
    %1016 = vmatprep.subr.bf16.mxu0 %v711
    %1017 = vmatpush1.bf16.msra.mxu0 %v710
    %1018 = vmatprep.subr.bf16.mxu0 %v716
    %1019 = vmatpush1.bf16.msra.mxu0 %v715
    %1020 = vmatprep.subr.bf16.mxu0 %v721
    %1021 = vmatpush1.bf16.msra.mxu0 %v720
    %1022 = vmatprep.subr.bf16.mxu0 %v726
    %1023 = vmatpush1.bf16.msra.mxu0 %v725
    %1024 = vmatprep.subr.bf16.mxu0 %v731
    %1025 = vmatpush1.bf16.msra.mxu0 %v730
    %1026 = vmatprep.subr.bf16.mxu0 %v736
    %1027 = vmatpush1.bf16.msra.mxu0 %v735
    %1028 = vmatprep.subr.bf16.mxu0 %v741
    %1029 = vmatpush1.bf16.msra.mxu0 %v740
    %1030 = vmatprep.subr.bf16.mxu0 %v746
    %1031 = vmatpush1.bf16.msra.mxu0 %v745
    %1032 = vmatprep.subr.bf16.mxu0 %v888
    %1033 = vmatpush1.bf16.msra.mxu0 %v885
    %1034 = vmatprep.subr.bf16.mxu0 0
    %1035 = vmatpush1.bf16.msra.mxu0 0
    %1036 = vmatprep.subr.bf16.mxu0 0
    %1037 = vmatpush1.bf16.msra.mxu0 0
    %1038 = vmatprep.subr.bf16.mxu0 0
    %1039 = vmatpush1.bf16.msra.mxu0 0
    %1040 = vmatprep.subr.bf16.mxu0 0
    %1041 = vmatpush1.bf16.msra.mxu0 0
    %1042 = vmatprep.subr.bf16.mxu0 0
    %1043 = vmatpush1.bf16.msra.mxu0 0
    %1044 = vmatprep.subr.bf16.mxu0 0
    %1045 = vmatpush1.bf16.msra.mxu0 0
    %1046 = vmatprep.subr.bf16.mxu0 0
    %1047 = vmatpush1.bf16.msra.mxu0 0
    %1048 = vmatprep.mubr.bf16.mxu0 %v875
    %1049 = vmatmul.mubr.bf16.gmra.mrb[0].mxu0 %v231
    %v1050 = vpop.f32.mrb[0].mxu0
    %v1051 = vadd.f32 %v1010, %v1050
    %v1052 = vpop.f32.mrb[0].mxu0
    %v1053 = vadd.f32 %v1012, %v1052
    %v1054 = vpop.f32.mrb[0].mxu0
    %v1055 = vpop.f32.mrb[0].mxu0
    %1056 = vdwg.mxu0
    %1057 = vmatprep.subr.bf16.mxu0 0
    %1058 = vmatpush1.bf16.msra.mxu0 %v632
    %1059 = vmatprep.subr.bf16.mxu0 0
    %1060 = vmatpush1.bf16.msra.mxu0 %v637
    %1061 = vmatprep.subr.bf16.mxu0 0
    %1062 = vmatpush1.bf16.msra.mxu0 %v642
    %1063 = vmatprep.subr.bf16.mxu0 0
    %1064 = vmatpush1.bf16.msra.mxu0 %v647
    %1065 = vmatprep.subr.bf16.mxu0 0
    %1066 = vmatpush1.bf16.msra.mxu0 %v652
    %1067 = vmatprep.subr.bf16.mxu0 0
    %1068 = vmatpush1.bf16.msra.mxu0 %v657
    %1069 = vmatprep.subr.bf16.mxu0 0
    %1070 = vmatpush1.bf16.msra.mxu0 %v662
    %1071 = vmatprep.subr.bf16.mxu0 0
    %1072 = vmatpush1.bf16.msra.mxu0 %v667
    %1073 = vmatprep.subr.bf16.mxu0 0
    %1074 = vmatpush1.bf16.msra.mxu0 %v672
    %1075 = vmatprep.subr.bf16.mxu0 0
    %1076 = vmatpush1.bf16.msra.mxu0 %v677
    %1077 = vmatprep.subr.bf16.mxu0 0
    %1078 = vmatpush1.bf16.msra.mxu0 %v682
    %1079 = vmatprep.subr.bf16.mxu0 0
    %1080 = vmatpush1.bf16.msra.mxu0 %v687
    %1081 = vmatprep.subr.bf16.mxu0 0
    %1082 = vmatpush1.bf16.msra.mxu0 %v692
    %1083 = vmatprep.subr.bf16.mxu0 0
    %1084 = vmatpush1.bf16.msra.mxu0 %v697
    %1085 = vmatprep.subr.bf16.mxu0 0
    %1086 = vmatpush1.bf16.msra.mxu0 %v702
    %1087 = vmatprep.subr.bf16.mxu0 0
    %1088 = vmatpush1.bf16.msra.mxu0 %v707
    %1089 = vmatprep.mubr.bf16.mxu0 %v230
    %1090 = vmatmul.mubr.bf16.gmra.mrb[0].mxu0 %v229
    %v1091 = vpop.f32.mrb[0].mxu0
    %v1092 = vadd.f32 %v217, %v1091
    %v1093 = vpop.f32.mrb[0].mxu0
    %v1094 = vpop.f32.mrb[0].mxu0
    %v1095 = vpop.f32.mrb[0].mxu0
    %1096 = vdwg.mxu0
    %1097 = vmatprep.subr.bf16.mxu0 0
    %1098 = vmatpush1.bf16.msra.mxu0 %v712
    %1099 = vmatprep.subr.bf16.mxu0 0
    %1100 = vmatpush1.bf16.msra.mxu0 %v717
    %1101 = vmatprep.subr.bf16.mxu0 0
    %1102 = vmatpush1.bf16.msra.mxu0 %v722
    %1103 = vmatprep.subr.bf16.mxu0 0
    %1104 = vmatpush1.bf16.msra.mxu0 %v727
    %1105 = vmatprep.subr.bf16.mxu0 0
    %1106 = vmatpush1.bf16.msra.mxu0 %v732
    %1107 = vmatprep.subr.bf16.mxu0 0
    %1108 = vmatpush1.bf16.msra.mxu0 %v737
    %1109 = vmatprep.subr.bf16.mxu0 0
    %1110 = vmatpush1.bf16.msra.mxu0 %v742
    %1111 = vmatprep.subr.bf16.mxu0 0
    %1112 = vmatpush1.bf16.msra.mxu0 %v747
    %1113 = vmatprep.subr.bf16.mxu0 0
    %1114 = vmatpush1.bf16.msra.mxu0 %v891
    %1115 = vmatprep.subr.bf16.mxu0 0
    %1116 = vmatpush1.bf16.msra.mxu0 0
    %1117 = vmatprep.subr.bf16.mxu0 0
    %1118 = vmatpush1.bf16.msra.mxu0 0
    %1119 = vmatprep.subr.bf16.mxu0 0
    %1120 = vmatpush1.bf16.msra.mxu0 0
    %1121 = vmatprep.subr.bf16.mxu0 0
    %1122 = vmatpush1.bf16.msra.mxu0 0
    %1123 = vmatprep.subr.bf16.mxu0 0
    %1124 = vmatpush1.bf16.msra.mxu0 0
    %1125 = vmatprep.subr.bf16.mxu0 0
    %1126 = vmatpush1.bf16.msra.mxu0 0
    %1127 = vmatprep.subr.bf16.mxu0 0
    %1128 = vmatpush1.bf16.msra.mxu0 0
    %1129 = vmatprep.mubr.bf16.mxu0 %v875
    %1130 = vmatmul.mubr.bf16.gmra.mrb[0].mxu0 %v231
    %v1131 = vpop.f32.mrb[0].mxu0
    %v1132 = vadd.f32 %v1092, %v1131
    %v1133 = vpop.f32.mrb[0].mxu0
    %v1134 = vpop.f32.mrb[0].mxu0
    %v1135 = vpop.f32.mrb[0].mxu0
    %1136 = vdwg.mxu0
    %v1137 = vmax.f32 %v969, 0.0
    %v1138 = vmax.f32 %v971, 0.0
    %v1139 = vmax.f32 %v1051, 0.0
    %v1140 = vmax.f32 %v1053, 0.0
    %v1141 = vmax.f32 %v1132, 0.0
    %v1142 = vpack.c.bf16 %v1137, %v1137
    %v1143 = vpack.c.bf16 %v1138, %v1138
    %v1144 = vpack.c.bf16 %v1139, %v1139
    %v1145 = vpack.c.bf16 %v1140, %v1140
    %v1146 = vpack.c.bf16 %v1141, %v1141
    %v1147 = vld [vmem:[#allocation2] sm:$0xff]
    %v1148 = vld [vmem:[#allocation2 + $0x8] sm:$0xff]
    %v1149 = vld [vmem:[#allocation2 + $0x10] sm:$0xf]
    %v1150 = vld [vmem:[#allocation2 + $0x14] sm:$0xff]
    %v1151 = vld [vmem:[#allocation2 + $0x1c] sm:$0xff]
    %v1152 = vld [vmem:[#allocation2 + $0x24] sm:$0xf]
    %v1153 = vld [vmem:[#allocation2 + $0x28] sm:$0xff]
    %v1154 = vld [vmem:[#allocation2 + $0x30] sm:$0xff]
    %v1155 = vld [vmem:[#allocation2 + $0x38] sm:$0xf]
    %v1156 = vld [vmem:[#allocation2 + $0x3c] sm:$0xff]
    %v1157 = vld [vmem:[#allocation2 + $0x44] sm:$0xff]
    %v1158 = vld [vmem:[#allocation2 + $0x4c] sm:$0xf]
    %v1159 = vld [vmem:[#allocation2 + $0x50] sm:$0xff]
    %v1160 = vld [vmem:[#allocation2 + $0x58] sm:$0xff]
    %v1161 = vld [vmem:[#allocation2 + $0x60] sm:$0xf]
    %v1162 = vld [vmem:[#allocation2 + $0x64] sm:$0xff]
    %v1163 = vld [vmem:[#allocation2 + $0x6c] sm:$0xff]
    %v1164 = vld [vmem:[#allocation2 + $0x74] sm:$0xf]
    %v1165 = vld [vmem:[#allocation2 + $0x78] sm:$0xff]
    %v1166 = vld [vmem:[#allocation2 + $0x80] sm:$0xff]
    %v1167 = vld [vmem:[#allocation2 + $0x88] sm:$0xf]
    %v1168 = vld [vmem:[#allocation2 + $0x8c] sm:$0xff]
    %v1169 = vld [vmem:[#allocation2 + $0x94] sm:$0xff]
    %v1170 = vld [vmem:[#allocation2 + $0x9c] sm:$0xf]
    %v1171 = vld [vmem:[#allocation2 + $0xa0] sm:$0xff]
    %v1172 = vld [vmem:[#allocation2 + $0xa8] sm:$0xff]
    %v1173 = vld [vmem:[#allocation2 + $0xb0] sm:$0xf]
    %v1174 = vld [vmem:[#allocation2 + $0xb4] sm:$0xff]
    %v1175 = vld [vmem:[#allocation2 + $0xbc] sm:$0xff]
    %v1176 = vld [vmem:[#allocation2 + $0xc4] sm:$0xf]
    %v1177 = vld [vmem:[#allocation2 + $0xc8] sm:$0xff]
    %v1178 = vld [vmem:[#allocation2 + $0xd0] sm:$0xff]
    %v1179 = vld [vmem:[#allocation2 + $0xd8] sm:$0xf]
    %v1180 = vld [vmem:[#allocation2 + $0xdc] sm:$0xff]
    %v1181 = vld [vmem:[#allocation2 + $0xe4] sm:$0xff]
    %v1182 = vld [vmem:[#allocation2 + $0xec] sm:$0xf]
    %v1183 = vld [vmem:[#allocation2 + $0xf0] sm:$0xff]
    %v1184 = vld [vmem:[#allocation2 + $0xf8] sm:$0xff]
    %v1185 = vld [vmem:[#allocation2 + $0x100] sm:$0xf]
    %v1186 = vld [vmem:[#allocation2 + $0x104] sm:$0xff]
    %v1187 = vld [vmem:[#allocation2 + $0x10c] sm:$0xff]
    %v1188 = vld [vmem:[#allocation2 + $0x114] sm:$0xf]
    %v1189 = vld [vmem:[#allocation2 + $0x118] sm:$0xff]
    %v1190 = vld [vmem:[#allocation2 + $0x120] sm:$0xff]
    %v1191 = vld [vmem:[#allocation2 + $0x128] sm:$0xf]
    %v1192 = vld [vmem:[#allocation2 + $0x12c] sm:$0xff]
    %v1193 = vld [vmem:[#allocation2 + $0x134] sm:$0xff]
    %v1194 = vld [vmem:[#allocation2 + $0x13c] sm:$0xf]
    %v1195 = vld [vmem:[#allocation2 + $0x140] sm:$0xff]
    %v1196 = vld [vmem:[#allocation2 + $0x148] sm:$0xff]
    %v1197 = vld [vmem:[#allocation2 + $0x150] sm:$0xf]
    %v1198 = vld [vmem:[#allocation2 + $0x154] sm:$0xff]
    %v1199 = vld [vmem:[#allocation2 + $0x15c] sm:$0xff]
    %v1200 = vld [vmem:[#allocation2 + $0x164] sm:$0xf]
    %v1201 = vld [vmem:[#allocation2 + $0x168] sm:$0xff]
    %v1202 = vld [vmem:[#allocation2 + $0x170] sm:$0xff]
    %v1203 = vld [vmem:[#allocation2 + $0x178] sm:$0xf]
    %v1204 = vld [vmem:[#allocation2 + $0x17c] sm:$0xff]
    %v1205 = vld [vmem:[#allocation2 + $0x184] sm:$0xff]
    %v1206 = vld [vmem:[#allocation2 + $0x18c] sm:$0xf]
    %v1207 = vld [vmem:[#allocation2 + $0x190] sm:$0xff]
    %v1208 = vld [vmem:[#allocation2 + $0x198] sm:$0xff]
    %v1209 = vld [vmem:[#allocation2 + $0x1a0] sm:$0xf]
    %v1210 = vld [vmem:[#allocation2 + $0x1a4] sm:$0xff]
    %v1211 = vld [vmem:[#allocation2 + $0x1ac] sm:$0xff]
    %v1212 = vld [vmem:[#allocation2 + $0x1b4] sm:$0xf]
    %v1213 = vld [vmem:[#allocation2 + $0x1b8] sm:$0xff]
    %v1214 = vld [vmem:[#allocation2 + $0x1c0] sm:$0xff]
    %v1215 = vld [vmem:[#allocation2 + $0x1c8] sm:$0xf]
    %v1216 = vld [vmem:[#allocation2 + $0x1cc] sm:$0xff]
    %v1217 = vld [vmem:[#allocation2 + $0x1d4] sm:$0xff]
    %v1218 = vld [vmem:[#allocation2 + $0x1dc] sm:$0xf]
    %v1219 = vld [vmem:[#allocation2 + $0x1e0] sm:$0xff]
    %v1220 = vld [vmem:[#allocation2 + $0x1e8] sm:$0xff]
    %v1221 = vld [vmem:[#allocation2 + $0x1f0] sm:$0xf]
    %v1222 = vld [vmem:[#allocation2 + $0x1f4] sm:$0xff]
    %v1223 = vld [vmem:[#allocation2 + $0x1fc] sm:$0xff]
    %v1224 = vld [vmem:[#allocation2 + $0x204] sm:$0xf]
    %v1225 = vld [vmem:[#allocation2 + $0x208] sm:$0xff]
    %v1226 = vld [vmem:[#allocation2 + $0x210] sm:$0xff]
    %v1227 = vld [vmem:[#allocation2 + $0x218] sm:$0xf]
    %v1228 = vld [vmem:[#allocation2 + $0x21c] sm:$0xff]
    %v1229 = vld [vmem:[#allocation2 + $0x224] sm:$0xff]
    %v1230 = vld [vmem:[#allocation2 + $0x22c] sm:$0xf]
    %v1231 = vld [vmem:[#allocation2 + $0x230] sm:$0xff]
    %v1232 = vld [vmem:[#allocation2 + $0x238] sm:$0xff]
    %v1233 = vld [vmem:[#allocation2 + $0x240] sm:$0xf]
    %v1234 = vld [vmem:[#allocation2 + $0x244] sm:$0xff]
    %v1235 = vld [vmem:[#allocation2 + $0x24c] sm:$0xff]
    %v1236 = vld [vmem:[#allocation2 + $0x254] sm:$0xf]
    %v1237 = vld [vmem:[#allocation2 + $0x258] sm:$0xff]
    %v1238 = vld [vmem:[#allocation2 + $0x260] sm:$0xff]
    %v1239 = vld [vmem:[#allocation2 + $0x268] sm:$0xf]
    %v1240 = vld [vmem:[#allocation2 + $0x26c] sm:$0xff]
    %v1241 = vld [vmem:[#allocation2 + $0x274] sm:$0xff]
    %v1242 = vld [vmem:[#allocation2 + $0x27c] sm:$0xf]
    %v1243 = vld [vmem:[#allocation2 + $0x280] sm:$0xff]
    %v1244 = vld [vmem:[#allocation2 + $0x288] sm:$0xff]
    %v1245 = vld [vmem:[#allocation2 + $0x290] sm:$0xf]
    %v1246 = vld [vmem:[#allocation2 + $0x294] sm:$0xff]
    %v1247 = vld [vmem:[#allocation2 + $0x29c] sm:$0xff]
    %v1248 = vld [vmem:[#allocation2 + $0x2a4] sm:$0xf]
    %v1249 = vld [vmem:[#allocation2 + $0x2a8] sm:$0xff]
    %v1250 = vld [vmem:[#allocation2 + $0x2b0] sm:$0xff]
    %v1251 = vld [vmem:[#allocation2 + $0x2b8] sm:$0xf]
    %v1252 = vld [vmem:[#allocation2 + $0x2bc] sm:$0xff]
    %v1253 = vld [vmem:[#allocation2 + $0x2c4] sm:$0xff]
    %v1254 = vld [vmem:[#allocation2 + $0x2cc] sm:$0xf]
    %v1255 = vld [vmem:[#allocation2 + $0x2d0] sm:$0xff]
    %v1256 = vld [vmem:[#allocation2 + $0x2d8] sm:$0xff]
    %v1257 = vld [vmem:[#allocation2 + $0x2e0] sm:$0xf]
    %v1258 = vld [vmem:[#allocation2 + $0x2e4] sm:$0xff]
    %v1259 = vld [vmem:[#allocation2 + $0x2ec] sm:$0xff]
    %v1260 = vld [vmem:[#allocation2 + $0x2f4] sm:$0xf]
    %v1261 = vld [vmem:[#allocation2 + $0x2f8] sm:$0xff]
    %v1262 = vld [vmem:[#allocation2 + $0x300] sm:$0xff]
    %v1263 = vld [vmem:[#allocation2 + $0x308] sm:$0xf]
    %v1264 = vld [vmem:[#allocation2 + $0x30c] sm:$0xff]
    %v1265 = vld [vmem:[#allocation2 + $0x314] sm:$0xff]
    %v1266 = vld [vmem:[#allocation2 + $0x31c] sm:$0xf]
    %v1267 = vld [vmem:[#allocation2 + $0x320] sm:$0xff]
    %v1268 = vld [vmem:[#allocation2 + $0x328] sm:$0xff]
    %v1269 = vld [vmem:[#allocation2 + $0x330] sm:$0xf]
    %v1270 = vld [vmem:[#allocation2 + $0x334] sm:$0xff]
    %v1271 = vld [vmem:[#allocation2 + $0x33c] sm:$0xff]
    %v1272 = vld [vmem:[#allocation2 + $0x344] sm:$0xf]
    %v1273 = vld [vmem:[#allocation2 + $0x348] sm:$0xff]
    %v1274 = vld [vmem:[#allocation2 + $0x350] sm:$0xff]
    %v1275 = vld [vmem:[#allocation2 + $0x358] sm:$0xf]
    %v1276 = vld [vmem:[#allocation2 + $0x35c] sm:$0xff]
    %v1277 = vld [vmem:[#allocation2 + $0x364] sm:$0xff]
    %v1278 = vld [vmem:[#allocation2 + $0x36c] sm:$0xf]
    %v1279 = vld [vmem:[#allocation2 + $0x370] sm:$0xff]
    %v1280 = vld [vmem:[#allocation2 + $0x378] sm:$0xff]
    %v1281 = vld [vmem:[#allocation2 + $0x380] sm:$0xf]
    %v1282 = vld [vmem:[#allocation2 + $0x384] sm:$0xff]
    %v1283 = vld [vmem:[#allocation2 + $0x38c] sm:$0xff]
    %v1284 = vld [vmem:[#allocation2 + $0x394] sm:$0xf]
    %v1285 = vld [vmem:[#allocation2 + $0x398] sm:$0xff]
    %v1286 = vld [vmem:[#allocation2 + $0x3a0] sm:$0xff]
    %v1287 = vld [vmem:[#allocation2 + $0x3a8] sm:$0xf]
    %v1288 = vld [vmem:[#allocation2 + $0x3ac] sm:$0xff]
    %v1289 = vld [vmem:[#allocation2 + $0x3b4] sm:$0xff]
    %v1290 = vld [vmem:[#allocation2 + $0x3bc] sm:$0xf]
    %v1291 = vld [vmem:[#allocation2 + $0x3c0] sm:$0xff]
    %v1292 = vld [vmem:[#allocation2 + $0x3c8] sm:$0xff]
    %v1293 = vld [vmem:[#allocation2 + $0x3d0] sm:$0xf]
    %v1294 = vld [vmem:[#allocation2 + $0x3d4] sm:$0xff]
    %v1295 = vld [vmem:[#allocation2 + $0x3dc] sm:$0xff]
    %v1296 = vld [vmem:[#allocation2 + $0x3e4] sm:$0xf]
    %v1297 = vld [vmem:[#allocation2 + $0x3e8] sm:$0xff]
    %v1298 = vld [vmem:[#allocation2 + $0x3f0] sm:$0xff]
    %v1299 = vld [vmem:[#allocation2 + $0x3f8] sm:$0xf]
    %v1300 = vld [vmem:[#allocation2 + $0x3fc] sm:$0xff]
    %v1301 = vld [vmem:[#allocation2 + $0x404] sm:$0xff]
    %v1302 = vld [vmem:[#allocation2 + $0x40c] sm:$0xf]
    %v1303 = vld [vmem:[#allocation2 + $0x410] sm:$0xff]
    %v1304 = vld [vmem:[#allocation2 + $0x418] sm:$0xff]
    %v1305 = vld [vmem:[#allocation2 + $0x420] sm:$0xf]
    %v1306 = vld [vmem:[#allocation2 + $0x424] sm:$0xff]
    %v1307 = vld [vmem:[#allocation2 + $0x42c] sm:$0xff]
    %v1308 = vld [vmem:[#allocation2 + $0x434] sm:$0xf]
    %v1309 = vld [vmem:[#allocation2 + $0x438] sm:$0xff]
    %v1310 = vld [vmem:[#allocation2 + $0x440] sm:$0xff]
    %v1311 = vld [vmem:[#allocation2 + $0x448] sm:$0xf]
    %v1312 = vld [vmem:[#allocation2 + $0x44c] sm:$0xff]
    %v1313 = vld [vmem:[#allocation2 + $0x454] sm:$0xff]
    %v1314 = vld [vmem:[#allocation2 + $0x45c] sm:$0xf]
    %v1315 = vld [vmem:[#allocation2 + $0x460] sm:$0xff]
    %v1316 = vld [vmem:[#allocation2 + $0x468] sm:$0xff]
    %v1317 = vld [vmem:[#allocation2 + $0x470] sm:$0xf]
    %v1318 = vld [vmem:[#allocation2 + $0x474] sm:$0xff]
    %v1319 = vld [vmem:[#allocation2 + $0x47c] sm:$0xff]
    %v1320 = vld [vmem:[#allocation2 + $0x484] sm:$0xf]
    %v1321 = vld [vmem:[#allocation2 + $0x488] sm:$0xff]
    %v1322 = vld [vmem:[#allocation2 + $0x490] sm:$0xff]
    %v1323 = vld [vmem:[#allocation2 + $0x498] sm:$0xf]
    %v1324 = vld [vmem:[#allocation2 + $0x49c] sm:$0xff]
    %v1325 = vld [vmem:[#allocation2 + $0x4a4] sm:$0xff]
    %v1326 = vld [vmem:[#allocation2 + $0x4ac] sm:$0xf]
    %v1327 = vld [vmem:[#allocation2 + $0x4b0] sm:$0xff]
    %v1328 = vld [vmem:[#allocation2 + $0x4b8] sm:$0xff]
    %v1329 = vld [vmem:[#allocation2 + $0x4c0] sm:$0xf]
    %v1330 = vld [vmem:[#allocation2 + $0x4c4] sm:$0xff]
    %v1331 = vld [vmem:[#allocation2 + $0x4cc] sm:$0xff]
    %v1332 = vld [vmem:[#allocation2 + $0x4d4] sm:$0xf]
    %v1333 = vld [vmem:[#allocation2 + $0x4d8] sm:$0xff]
    %v1334 = vld [vmem:[#allocation2 + $0x4e0] sm:$0xff]
    %v1335 = vld [vmem:[#allocation2 + $0x4e8] sm:$0xf]
    %v1336 = vld [vmem:[#allocation2 + $0x4ec] sm:$0xff]
    %v1337 = vld [vmem:[#allocation2 + $0x4f4] sm:$0xff]
    %v1338 = vld [vmem:[#allocation2 + $0x4fc] sm:$0xf]
    %v1339 = vld [vmem:[#allocation2 + $0x500] sm:$0xff]
    %v1340 = vld [vmem:[#allocation2 + $0x508] sm:$0xff]
    %v1341 = vld [vmem:[#allocation2 + $0x510] sm:$0xf]
    %v1342 = vld [vmem:[#allocation2 + $0x514] sm:$0xff]
    %v1343 = vld [vmem:[#allocation2 + $0x51c] sm:$0xff]
    %v1344 = vld [vmem:[#allocation2 + $0x524] sm:$0xf]
    %v1345 = vld [vmem:[#allocation2 + $0x528] sm:$0xff]
    %v1346 = vld [vmem:[#allocation2 + $0x530] sm:$0xff]
    %v1347 = vld [vmem:[#allocation2 + $0x538] sm:$0xf]
    %v1348 = vld [vmem:[#allocation2 + $0x53c] sm:$0xff]
    %v1349 = vld [vmem:[#allocation2 + $0x544] sm:$0xff]
    %v1350 = vld [vmem:[#allocation2 + $0x54c] sm:$0xf]
    %v1351 = vld [vmem:[#allocation2 + $0x550] sm:$0xff]
    %v1352 = vld [vmem:[#allocation2 + $0x558] sm:$0xff]
    %v1353 = vld [vmem:[#allocation2 + $0x560] sm:$0xf]
    %v1354 = vld [vmem:[#allocation2 + $0x564] sm:$0xff]
    %v1355 = vld [vmem:[#allocation2 + $0x56c] sm:$0xff]
    %v1356 = vld [vmem:[#allocation2 + $0x574] sm:$0xf]
    %v1357 = vld [vmem:[#allocation2 + $0x578] sm:$0xff]
    %v1358 = vld [vmem:[#allocation2 + $0x580] sm:$0xff]
    %v1359 = vld [vmem:[#allocation2 + $0x588] sm:$0xf]
    %v1360 = vld [vmem:[#allocation2 + $0x58c] sm:$0xff]
    %v1361 = vld [vmem:[#allocation2 + $0x594] sm:$0xff]
    %v1362 = vld [vmem:[#allocation2 + $0x59c] sm:$0xf]
    %v1363 = vld [vmem:[%s4] sm:$0x1f]
    %v1365 = vlaneseq
    %v1366 = vshrl.u32 %v1365, 7
    %v1367 = vsub.s32 0, %v1366
    %v1368 = vrot.slane %v1363, %v1367
    %v1369 = vlaneseq
    %v1370 = vshrl.u32 %v1369, 7
    %v1371 = vsub.s32 1, %v1370
    %v1372 = vrot.slane %v1363, %v1371
    %v1373 = vlaneseq
    %v1374 = vshrl.u32 %v1373, 7
    %v1375 = vsub.s32 2, %v1374
    %v1376 = vrot.slane %v1363, %v1375
    %v1377 = vlaneseq
    %v1378 = vshrl.u32 %v1377, 7
    %v1379 = vsub.s32 3, %v1378
    %v1380 = vrot.slane %v1363, %v1379
    %v1381 = vlaneseq
    %v1382 = vshrl.u32 %v1381, 7
    %v1383 = vsub.s32 4, %v1382
    %v1384 = vrot.slane %v1363, %v1383
    %v1606 = vunpack.c.l.b16 %v1147
    %v1607 = vunpack.c.h.b16 %v1147
    %v1608 = vunpack.c.l.b16 %v1148
    %v1609 = vunpack.c.h.b16 %v1148
    %v1610 = vunpack.c.l.b16 %v1149
    %v1611 = vunpack.c.l.b16 %v1150
    %v1612 = vunpack.c.h.b16 %v1150
    %v1613 = vunpack.c.l.b16 %v1151
    %v1614 = vunpack.c.h.b16 %v1151
    %v1615 = vunpack.c.l.b16 %v1152
    %v1616 = vunpack.c.l.b16 %v1153
    %v1617 = vunpack.c.h.b16 %v1153
    %v1618 = vunpack.c.l.b16 %v1154
    %v1619 = vunpack.c.h.b16 %v1154
    %v1620 = vunpack.c.l.b16 %v1155
    %v1621 = vunpack.c.l.b16 %v1156
    %v1622 = vunpack.c.h.b16 %v1156
    %v1623 = vunpack.c.l.b16 %v1157
    %v1624 = vunpack.c.h.b16 %v1157
    %v1625 = vunpack.c.l.b16 %v1158
    %v1626 = vunpack.c.l.b16 %v1159
    %v1627 = vunpack.c.h.b16 %v1159
    %v1628 = vunpack.c.l.b16 %v1160
    %v1629 = vunpack.c.h.b16 %v1160
    %v1630 = vunpack.c.l.b16 %v1161
    %v1631 = vunpack.c.l.b16 %v1162
    %v1632 = vunpack.c.h.b16 %v1162
    %v1633 = vunpack.c.l.b16 %v1163
    %v1634 = vunpack.c.h.b16 %v1163
    %v1635 = vunpack.c.l.b16 %v1164
    %v1636 = vunpack.c.l.b16 %v1165
    %v1637 = vunpack.c.h.b16 %v1165
    %v1638 = vunpack.c.l.b16 %v1166
    %v1639 = vunpack.c.h.b16 %v1166
    %v1640 = vunpack.c.l.b16 %v1167
    %v1641 = vunpack.c.l.b16 %v1168
    %v1642 = vunpack.c.h.b16 %v1168
    %v1643 = vunpack.c.l.b16 %v1169
    %v1644 = vunpack.c.h.b16 %v1169
    %v1645 = vunpack.c.l.b16 %v1170
    %v1646 = vunpack.c.l.b16 %v1171
    %v1647 = vunpack.c.h.b16 %v1171
    %v1648 = vunpack.c.l.b16 %v1172
    %v1649 = vunpack.c.h.b16 %v1172
    %v1650 = vunpack.c.l.b16 %v1173
    %v1651 = vunpack.c.l.b16 %v1174
    %v1652 = vunpack.c.h.b16 %v1174
    %v1653 = vunpack.c.l.b16 %v1175
    %v1654 = vunpack.c.h.b16 %v1175
    %v1655 = vunpack.c.l.b16 %v1176
    %v1656 = vunpack.c.l.b16 %v1177
    %v1657 = vunpack.c.h.b16 %v1177
    %v1658 = vunpack.c.l.b16 %v1178
    %v1659 = vunpack.c.h.b16 %v1178
    %v1660 = vunpack.c.l.b16 %v1179
    %v1661 = vunpack.c.l.b16 %v1180
    %v1662 = vunpack.c.h.b16 %v1180
    %v1663 = vunpack.c.l.b16 %v1181
    %v1664 = vunpack.c.h.b16 %v1181
    %v1665 = vunpack.c.l.b16 %v1182
    %v1666 = vunpack.c.l.b16 %v1183
    %v1667 = vunpack.c.h.b16 %v1183
    %v1668 = vunpack.c.l.b16 %v1184
    %v1669 = vunpack.c.h.b16 %v1184
    %v1670 = vunpack.c.l.b16 %v1185
    %v1671 = vunpack.c.l.b16 %v1186
    %v1672 = vunpack.c.h.b16 %v1186
    %v1673 = vunpack.c.l.b16 %v1187
    %v1674 = vunpack.c.h.b16 %v1187
    %v1675 = vunpack.c.l.b16 %v1188
    %v1676 = vunpack.c.l.b16 %v1189
    %v1677 = vunpack.c.h.b16 %v1189
    %v1678 = vunpack.c.l.b16 %v1190
    %v1679 = vunpack.c.h.b16 %v1190
    %v1680 = vunpack.c.l.b16 %v1191
    %v1681 = vunpack.c.l.b16 %v1192
    %v1682 = vunpack.c.h.b16 %v1192
    %v1683 = vunpack.c.l.b16 %v1193
    %v1684 = vunpack.c.h.b16 %v1193
    %v1685 = vunpack.c.l.b16 %v1194
    %v1686 = vunpack.c.l.b16 %v1195
    %v1687 = vunpack.c.h.b16 %v1195
    %v1688 = vunpack.c.l.b16 %v1196
    %v1689 = vunpack.c.h.b16 %v1196
    %v1690 = vunpack.c.l.b16 %v1197
    %v1691 = vunpack.c.l.b16 %v1198
    %v1692 = vunpack.c.h.b16 %v1198
    %v1693 = vunpack.c.l.b16 %v1199
    %v1694 = vunpack.c.h.b16 %v1199
    %v1695 = vunpack.c.l.b16 %v1200
    %v1696 = vunpack.c.l.b16 %v1201
    %v1697 = vunpack.c.h.b16 %v1201
    %v1698 = vunpack.c.l.b16 %v1202
    %v1699 = vunpack.c.h.b16 %v1202
    %v1700 = vunpack.c.l.b16 %v1203
    %v1701 = vunpack.c.l.b16 %v1204
    %v1702 = vunpack.c.h.b16 %v1204
    %v1703 = vunpack.c.l.b16 %v1205
    %v1704 = vunpack.c.h.b16 %v1205
    %v1705 = vunpack.c.l.b16 %v1206
    %v1706 = vunpack.c.l.b16 %v1207
    %v1707 = vunpack.c.h.b16 %v1207
    %v1708 = vunpack.c.l.b16 %v1208
    %v1709 = vunpack.c.h.b16 %v1208
    %v1710 = vunpack.c.l.b16 %v1209
    %v1711 = vunpack.c.l.b16 %v1210
    %v1712 = vunpack.c.h.b16 %v1210
    %v1713 = vunpack.c.l.b16 %v1211
    %v1714 = vunpack.c.h.b16 %v1211
    %v1715 = vunpack.c.l.b16 %v1212
    %v1716 = vunpack.c.l.b16 %v1213
    %v1717 = vunpack.c.h.b16 %v1213
    %v1718 = vunpack.c.l.b16 %v1214
    %v1719 = vunpack.c.h.b16 %v1214
    %v1720 = vunpack.c.l.b16 %v1215
    %v1721 = vunpack.c.l.b16 %v1216
    %v1722 = vunpack.c.h.b16 %v1216
    %v1723 = vunpack.c.l.b16 %v1217
    %v1724 = vunpack.c.h.b16 %v1217
    %v1725 = vunpack.c.l.b16 %v1218
    %v1726 = vunpack.c.l.b16 %v1219
    %v1727 = vunpack.c.h.b16 %v1219
    %v1728 = vunpack.c.l.b16 %v1220
    %v1729 = vunpack.c.h.b16 %v1220
    %v1730 = vunpack.c.l.b16 %v1221
    %v1731 = vunpack.c.l.b16 %v1222
    %v1732 = vunpack.c.h.b16 %v1222
    %v1733 = vunpack.c.l.b16 %v1223
    %v1734 = vunpack.c.h.b16 %v1223
    %v1735 = vunpack.c.l.b16 %v1224
    %v1736 = vunpack.c.l.b16 %v1225
    %v1737 = vunpack.c.h.b16 %v1225
    %v1738 = vunpack.c.l.b16 %v1226
    %v1739 = vunpack.c.h.b16 %v1226
    %v1740 = vunpack.c.l.b16 %v1227
    %v1741 = vunpack.c.l.b16 %v1228
    %v1742 = vunpack.c.h.b16 %v1228
    %v1743 = vunpack.c.l.b16 %v1229
    %v1744 = vunpack.c.h.b16 %v1229
    %v1745 = vunpack.c.l.b16 %v1230
    %v1746 = vunpack.c.l.b16 %v1231
    %v1747 = vunpack.c.h.b16 %v1231
    %v1748 = vunpack.c.l.b16 %v1232
    %v1749 = vunpack.c.h.b16 %v1232
    %v1750 = vunpack.c.l.b16 %v1233
    %v1751 = vunpack.c.l.b16 %v1234
    %v1752 = vunpack.c.h.b16 %v1234
    %v1753 = vunpack.c.l.b16 %v1235
    %v1754 = vunpack.c.h.b16 %v1235
    %v1755 = vunpack.c.l.b16 %v1236
    %v1756 = vunpack.c.l.b16 %v1237
    %v1757 = vunpack.c.h.b16 %v1237
    %v1758 = vunpack.c.l.b16 %v1238
    %v1759 = vunpack.c.h.b16 %v1238
    %v1760 = vunpack.c.l.b16 %v1239
    %v1761 = vunpack.c.l.b16 %v1240
    %v1762 = vunpack.c.h.b16 %v1240
    %v1763 = vunpack.c.l.b16 %v1241
    %v1764 = vunpack.c.h.b16 %v1241
    %v1765 = vunpack.c.l.b16 %v1242
    %v1766 = vunpack.c.l.b16 %v1243
    %v1767 = vunpack.c.h.b16 %v1243
    %v1768 = vunpack.c.l.b16 %v1244
    %v1769 = vunpack.c.h.b16 %v1244
    %v1770 = vunpack.c.l.b16 %v1245
    %v1771 = vunpack.c.l.b16 %v1246
    %v1772 = vunpack.c.h.b16 %v1246
    %v1773 = vunpack.c.l.b16 %v1247
    %v1774 = vunpack.c.h.b16 %v1247
    %v1775 = vunpack.c.l.b16 %v1248
    %v1776 = vunpack.c.l.b16 %v1249
    %v1777 = vunpack.c.h.b16 %v1249
    %v1778 = vunpack.c.l.b16 %v1250
    %v1779 = vunpack.c.h.b16 %v1250
    %v1780 = vunpack.c.l.b16 %v1251
    %v1781 = vunpack.c.l.b16 %v1252
    %v1782 = vunpack.c.h.b16 %v1252
    %v1783 = vunpack.c.l.b16 %v1253
    %v1784 = vunpack.c.h.b16 %v1253
    %v1785 = vunpack.c.l.b16 %v1254
    %v1786 = vunpack.c.l.b16 %v1255
    %v1787 = vunpack.c.h.b16 %v1255
    %v1788 = vunpack.c.l.b16 %v1256
    %v1789 = vunpack.c.h.b16 %v1256
    %v1790 = vunpack.c.l.b16 %v1257
    %v1791 = vunpack.c.l.b16 %v1258
    %v1792 = vunpack.c.h.b16 %v1258
    %v1793 = vunpack.c.l.b16 %v1259
    %v1794 = vunpack.c.h.b16 %v1259
    %v1795 = vunpack.c.l.b16 %v1260
    %v1796 = vunpack.c.l.b16 %v1261
    %v1797 = vunpack.c.h.b16 %v1261
    %v1798 = vunpack.c.l.b16 %v1262
    %v1799 = vunpack.c.h.b16 %v1262
    %v1800 = vunpack.c.l.b16 %v1263
    %v1801 = vunpack.c.l.b16 %v1264
    %v1802 = vunpack.c.h.b16 %v1264
    %v1803 = vunpack.c.l.b16 %v1265
    %v1804 = vunpack.c.h.b16 %v1265
    %v1805 = vunpack.c.l.b16 %v1266
    %v1806 = vunpack.c.l.b16 %v1267
    %v1807 = vunpack.c.h.b16 %v1267
    %v1808 = vunpack.c.l.b16 %v1268
    %v1809 = vunpack.c.h.b16 %v1268
    %v1810 = vunpack.c.l.b16 %v1269
    %v1811 = vunpack.c.l.b16 %v1270
    %v1812 = vunpack.c.h.b16 %v1270
    %v1813 = vunpack.c.l.b16 %v1271
    %v1814 = vunpack.c.h.b16 %v1271
    %v1815 = vunpack.c.l.b16 %v1272
    %v1816 = vunpack.c.l.b16 %v1273
    %v1817 = vunpack.c.h.b16 %v1273
    %v1818 = vunpack.c.l.b16 %v1274
    %v1819 = vunpack.c.h.b16 %v1274
    %v1820 = vunpack.c.l.b16 %v1275
    %v1821 = vunpack.c.l.b16 %v1276
    %v1822 = vunpack.c.h.b16 %v1276
    %v1823 = vunpack.c.l.b16 %v1277
    %v1824 = vunpack.c.h.b16 %v1277
    %v1825 = vunpack.c.l.b16 %v1278
    %v1826 = vunpack.c.l.b16 %v1279
    %v1827 = vunpack.c.h.b16 %v1279
    %v1828 = vunpack.c.l.b16 %v1280
    %v1829 = vunpack.c.h.b16 %v1280
    %v1830 = vunpack.c.l.b16 %v1281
    %v1831 = vunpack.c.l.b16 %v1282
    %v1832 = vunpack.c.h.b16 %v1282
    %v1833 = vunpack.c.l.b16 %v1283
    %v1834 = vunpack.c.h.b16 %v1283
    %v1835 = vunpack.c.l.b16 %v1284
    %v1836 = vunpack.c.l.b16 %v1285
    %v1837 = vunpack.c.h.b16 %v1285
    %v1838 = vunpack.c.l.b16 %v1286
    %v1839 = vunpack.c.h.b16 %v1286
    %v1840 = vunpack.c.l.b16 %v1287
    %v1841 = vunpack.c.l.b16 %v1288
    %v1842 = vunpack.c.h.b16 %v1288
    %v1843 = vunpack.c.l.b16 %v1289
    %v1844 = vunpack.c.h.b16 %v1289
    %v1845 = vunpack.c.l.b16 %v1290
    %v1846 = vunpack.c.l.b16 %v1291
    %v1847 = vunpack.c.h.b16 %v1291
    %v1848 = vunpack.c.l.b16 %v1292
    %v1849 = vunpack.c.h.b16 %v1292
    %v1850 = vunpack.c.l.b16 %v1293
    %v1851 = vunpack.c.l.b16 %v1294
    %v1852 = vunpack.c.h.b16 %v1294
    %v1853 = vunpack.c.l.b16 %v1295
    %v1854 = vunpack.c.h.b16 %v1295
    %v1855 = vunpack.c.l.b16 %v1296
    %v1856 = vunpack.c.l.b16 %v1297
    %v1857 = vunpack.c.h.b16 %v1297
    %v1858 = vunpack.c.l.b16 %v1298
    %v1859 = vunpack.c.h.b16 %v1298
    %v1860 = vunpack.c.l.b16 %v1299
    %v1861 = vunpack.c.l.b16 %v1300
    %v1862 = vunpack.c.h.b16 %v1300
    %v1863 = vunpack.c.l.b16 %v1301
    %v1864 = vunpack.c.h.b16 %v1301
    %v1865 = vunpack.c.l.b16 %v1302
    %v1866 = vunpack.c.l.b16 %v1303
    %v1867 = vunpack.c.h.b16 %v1303
    %v1868 = vunpack.c.l.b16 %v1304
    %v1869 = vunpack.c.h.b16 %v1304
    %v1870 = vunpack.c.l.b16 %v1305
    %v1871 = vunpack.c.l.b16 %v1306
    %v1872 = vunpack.c.h.b16 %v1306
    %v1873 = vunpack.c.l.b16 %v1307
    %v1874 = vunpack.c.h.b16 %v1307
    %v1875 = vunpack.c.l.b16 %v1308
    %v1876 = vunpack.c.l.b16 %v1309
    %v1877 = vunpack.c.h.b16 %v1309
    %v1878 = vunpack.c.l.b16 %v1310
    %v1879 = vunpack.c.h.b16 %v1310
    %v1880 = vunpack.c.l.b16 %v1311
    %v1881 = vunpack.c.l.b16 %v1312
    %v1882 = vunpack.c.h.b16 %v1312
    %v1883 = vunpack.c.l.b16 %v1313
    %v1884 = vunpack.c.h.b16 %v1313
    %v1885 = vunpack.c.l.b16 %v1314
    %v1886 = vunpack.c.l.b16 %v1315
    %v1887 = vunpack.c.h.b16 %v1315
    %v1888 = vunpack.c.l.b16 %v1316
    %v1889 = vunpack.c.h.b16 %v1316
    %v1890 = vunpack.c.l.b16 %v1317
    %v1891 = vunpack.c.l.b16 %v1318
    %v1892 = vunpack.c.h.b16 %v1318
    %v1893 = vunpack.c.l.b16 %v1319
    %v1894 = vunpack.c.h.b16 %v1319
    %v1895 = vunpack.c.l.b16 %v1320
    %v1896 = vunpack.c.l.b16 %v1321
    %v1897 = vunpack.c.h.b16 %v1321
    %v1898 = vunpack.c.l.b16 %v1322
    %v1899 = vunpack.c.h.b16 %v1322
    %v1900 = vunpack.c.l.b16 %v1323
    %v1901 = vunpack.c.l.b16 %v1324
    %v1902 = vunpack.c.h.b16 %v1324
    %v1903 = vunpack.c.l.b16 %v1325
    %v1904 = vunpack.c.h.b16 %v1325
    %v1905 = vunpack.c.l.b16 %v1326
    %v1906 = vunpack.c.l.b16 %v1327
    %v1907 = vunpack.c.h.b16 %v1327
    %v1908 = vunpack.c.l.b16 %v1328
    %v1909 = vunpack.c.h.b16 %v1328
    %v1910 = vunpack.c.l.b16 %v1329
    %v1911 = vunpack.c.l.b16 %v1330
    %v1912 = vunpack.c.h.b16 %v1330
    %v1913 = vunpack.c.l.b16 %v1331
    %v1914 = vunpack.c.h.b16 %v1331
    %v1915 = vunpack.c.l.b16 %v1332
    %v1916 = vunpack.c.l.b16 %v1333
    %v1917 = vunpack.c.h.b16 %v1333
    %v1918 = vunpack.c.l.b16 %v1334
    %v1919 = vunpack.c.h.b16 %v1334
    %v1920 = vunpack.c.l.b16 %v1335
    %v1921 = vunpack.c.l.b16 %v1336
    %v1922 = vunpack.c.h.b16 %v1336
    %v1923 = vunpack.c.l.b16 %v1337
    %v1924 = vunpack.c.h.b16 %v1337
    %v1925 = vunpack.c.l.b16 %v1338
    %v1926 = vunpack.c.l.b16 %v1339
    %v1927 = vunpack.c.h.b16 %v1339
    %v1928 = vunpack.c.l.b16 %v1340
    %v1929 = vunpack.c.h.b16 %v1340
    %v1930 = vunpack.c.l.b16 %v1341
    %v1931 = vunpack.c.l.b16 %v1342
    %v1932 = vunpack.c.h.b16 %v1342
    %v1933 = vunpack.c.l.b16 %v1343
    %v1934 = vunpack.c.h.b16 %v1343
    %v1935 = vunpack.c.l.b16 %v1344
    %v1936 = vunpack.c.l.b16 %v1345
    %v1937 = vunpack.c.h.b16 %v1345
    %v1938 = vunpack.c.l.b16 %v1346
    %v1939 = vunpack.c.h.b16 %v1346
    %v1940 = vunpack.c.l.b16 %v1347
    %v1941 = vunpack.c.l.b16 %v1348
    %v1942 = vunpack.c.h.b16 %v1348
    %v1943 = vunpack.c.l.b16 %v1349
    %v1944 = vunpack.c.h.b16 %v1349
    %v1945 = vunpack.c.l.b16 %v1350
    %v1946 = vunpack.c.l.b16 %v1351
    %v1947 = vunpack.c.h.b16 %v1351
    %v1948 = vunpack.c.l.b16 %v1352
    %v1949 = vunpack.c.h.b16 %v1352
    %v1950 = vunpack.c.l.b16 %v1353
    %v1951 = vunpack.c.l.b16 %v1354
    %v1952 = vunpack.c.h.b16 %v1354
    %v1953 = vunpack.c.l.b16 %v1355
    %v1954 = vunpack.c.h.b16 %v1355
    %v1955 = vunpack.c.l.b16 %v1356
    %v1956 = vunpack.c.l.b16 %v1357
    %v1957 = vunpack.c.h.b16 %v1357
    %v1958 = vunpack.c.l.b16 %v1358
    %v1959 = vunpack.c.h.b16 %v1358
    %v1960 = vunpack.c.l.b16 %v1359
    %v1961 = vunpack.c.l.b16 %v1360
    %v1962 = vunpack.c.h.b16 %v1360
    %v1963 = vunpack.c.l.b16 %v1361
    %v1964 = vunpack.c.h.b16 %v1361
    %v1965 = vunpack.c.l.b16 %v1362
    %v1966 = vpack.c.b16 %v1611, %v1606
    %v1967 = vpack.c.b16 %v1612, %v1607
    %v1968 = vpack.c.b16 %v1613, %v1608
    %v1969 = vpack.c.b16 %v1614, %v1609
    %v1970 = vpack.c.b16 %v1615, %v1610
    %v1971 = vpack.c.b16 %v1621, %v1616
    %v1972 = vpack.c.b16 %v1622, %v1617
    %v1973 = vpack.c.b16 %v1623, %v1618
    %v1974 = vpack.c.b16 %v1624, %v1619
    %v1975 = vpack.c.b16 %v1625, %v1620
    %v1976 = vpack.c.b16 %v1631, %v1626
    %v1977 = vpack.c.b16 %v1632, %v1627
    %v1978 = vpack.c.b16 %v1633, %v1628
    %v1979 = vpack.c.b16 %v1634, %v1629
    %v1980 = vpack.c.b16 %v1635, %v1630
    %v1981 = vpack.c.b16 %v1641, %v1636
    %v1982 = vpack.c.b16 %v1642, %v1637
    %v1983 = vpack.c.b16 %v1643, %v1638
    %v1984 = vpack.c.b16 %v1644, %v1639
    %v1985 = vpack.c.b16 %v1645, %v1640
    %v1986 = vpack.c.b16 %v1651, %v1646
    %v1987 = vpack.c.b16 %v1652, %v1647
    %v1988 = vpack.c.b16 %v1653, %v1648
    %v1989 = vpack.c.b16 %v1654, %v1649
    %v1990 = vpack.c.b16 %v1655, %v1650
    %v1991 = vpack.c.b16 %v1661, %v1656
    %v1992 = vpack.c.b16 %v1662, %v1657
    %v1993 = vpack.c.b16 %v1663, %v1658
    %v1994 = vpack.c.b16 %v1664, %v1659
    %v1995 = vpack.c.b16 %v1665, %v1660
    %v1996 = vpack.c.b16 %v1671, %v1666
    %v1997 = vpack.c.b16 %v1672, %v1667
    %v1998 = vpack.c.b16 %v1673, %v1668
    %v1999 = vpack.c.b16 %v1674, %v1669
    %v2000 = vpack.c.b16 %v1675, %v1670
    %v2001 = vpack.c.b16 %v1681, %v1676
    %v2002 = vpack.c.b16 %v1682, %v1677
    %v2003 = vpack.c.b16 %v1683, %v1678
    %v2004 = vpack.c.b16 %v1684, %v1679
    %v2005 = vpack.c.b16 %v1685, %v1680
    %v2006 = vpack.c.b16 %v1691, %v1686
    %v2007 = vpack.c.b16 %v1692, %v1687
    %v2008 = vpack.c.b16 %v1693, %v1688
    %v2009 = vpack.c.b16 %v1694, %v1689
    %v2010 = vpack.c.b16 %v1695, %v1690
    %v2011 = vpack.c.b16 %v1701, %v1696
    %v2012 = vpack.c.b16 %v1702, %v1697
    %v2013 = vpack.c.b16 %v1703, %v1698
    %v2014 = vpack.c.b16 %v1704, %v1699
    %v2015 = vpack.c.b16 %v1705, %v1700
    %v2016 = vpack.c.b16 %v1711, %v1706
    %v2017 = vpack.c.b16 %v1712, %v1707
    %v2018 = vpack.c.b16 %v1713, %v1708
    %v2019 = vpack.c.b16 %v1714, %v1709
    %v2020 = vpack.c.b16 %v1715, %v1710
    %v2021 = vpack.c.b16 %v1721, %v1716
    %v2022 = vpack.c.b16 %v1722, %v1717
    %v2023 = vpack.c.b16 %v1723, %v1718
    %v2024 = vpack.c.b16 %v1724, %v1719
    %v2025 = vpack.c.b16 %v1725, %v1720
    %v2026 = vpack.c.b16 %v1731, %v1726
    %v2027 = vpack.c.b16 %v1732, %v1727
    %v2028 = vpack.c.b16 %v1733, %v1728
    %v2029 = vpack.c.b16 %v1734, %v1729
    %v2030 = vpack.c.b16 %v1735, %v1730
    %v2031 = vpack.c.b16 %v1741, %v1736
    %v2032 = vpack.c.b16 %v1742, %v1737
    %v2033 = vpack.c.b16 %v1743, %v1738
    %v2034 = vpack.c.b16 %v1744, %v1739
    %v2035 = vpack.c.b16 %v1745, %v1740
    %v2036 = vpack.c.b16 %v1751, %v1746
    %v2037 = vpack.c.b16 %v1752, %v1747
    %v2038 = vpack.c.b16 %v1753, %v1748
    %v2039 = vpack.c.b16 %v1754, %v1749
    %v2040 = vpack.c.b16 %v1755, %v1750
    %v2041 = vpack.c.b16 %v1761, %v1756
    %v2042 = vpack.c.b16 %v1762, %v1757
    %v2043 = vpack.c.b16 %v1763, %v1758
    %v2044 = vpack.c.b16 %v1764, %v1759
    %v2045 = vpack.c.b16 %v1765, %v1760
    %v2046 = vpack.c.b16 %v1771, %v1766
    %v2047 = vpack.c.b16 %v1772, %v1767
    %v2048 = vpack.c.b16 %v1773, %v1768
    %v2049 = vpack.c.b16 %v1774, %v1769
    %v2050 = vpack.c.b16 %v1775, %v1770
    %v2051 = vpack.c.b16 %v1781, %v1776
    %v2052 = vpack.c.b16 %v1782, %v1777
    %v2053 = vpack.c.b16 %v1783, %v1778
    %v2054 = vpack.c.b16 %v1784, %v1779
    %v2055 = vpack.c.b16 %v1785, %v1780
    %v2056 = vpack.c.b16 %v1791, %v1786
    %v2057 = vpack.c.b16 %v1792, %v1787
    %v2058 = vpack.c.b16 %v1793, %v1788
    %v2059 = vpack.c.b16 %v1794, %v1789
    %v2060 = vpack.c.b16 %v1795, %v1790
    %v2061 = vpack.c.b16 %v1801, %v1796
    %v2062 = vpack.c.b16 %v1802, %v1797
    %v2063 = vpack.c.b16 %v1803, %v1798
    %v2064 = vpack.c.b16 %v1804, %v1799
    %v2065 = vpack.c.b16 %v1805, %v1800
    %v2066 = vpack.c.b16 %v1811, %v1806
    %v2067 = vpack.c.b16 %v1812, %v1807
    %v2068 = vpack.c.b16 %v1813, %v1808
    %v2069 = vpack.c.b16 %v1814, %v1809
    %v2070 = vpack.c.b16 %v1815, %v1810
    %v2071 = vpack.c.b16 %v1821, %v1816
    %v2072 = vpack.c.b16 %v1822, %v1817
    %v2073 = vpack.c.b16 %v1823, %v1818
    %v2074 = vpack.c.b16 %v1824, %v1819
    %v2075 = vpack.c.b16 %v1825, %v1820
    %v2076 = vpack.c.b16 %v1831, %v1826
    %v2077 = vpack.c.b16 %v1832, %v1827
    %v2078 = vpack.c.b16 %v1833, %v1828
    %v2079 = vpack.c.b16 %v1834, %v1829
    %v2080 = vpack.c.b16 %v1835, %v1830
    %v2081 = vpack.c.b16 %v1841, %v1836
    %v2082 = vpack.c.b16 %v1842, %v1837
    %v2083 = vpack.c.b16 %v1843, %v1838
    %v2084 = vpack.c.b16 %v1844, %v1839
    %v2085 = vpack.c.b16 %v1845, %v1840
    %v2086 = vpack.c.b16 %v1851, %v1846
    %v2087 = vpack.c.b16 %v1852, %v1847
    %v2088 = vpack.c.b16 %v1853, %v1848
    %v2089 = vpack.c.b16 %v1854, %v1849
    %v2090 = vpack.c.b16 %v1855, %v1850
    %v2091 = vpack.c.b16 %v1861, %v1856
    %v2092 = vpack.c.b16 %v1862, %v1857
    %v2093 = vpack.c.b16 %v1863, %v1858
    %v2094 = vpack.c.b16 %v1864, %v1859
    %v2095 = vpack.c.b16 %v1865, %v1860
    %v2096 = vpack.c.b16 %v1871, %v1866
    %v2097 = vpack.c.b16 %v1872, %v1867
    %v2098 = vpack.c.b16 %v1873, %v1868
    %v2099 = vpack.c.b16 %v1874, %v1869
    %v2100 = vpack.c.b16 %v1875, %v1870
    %v2101 = vpack.c.b16 %v1881, %v1876
    %v2102 = vpack.c.b16 %v1882, %v1877
    %v2103 = vpack.c.b16 %v1883, %v1878
    %v2104 = vpack.c.b16 %v1884, %v1879
    %v2105 = vpack.c.b16 %v1885, %v1880
    %v2106 = vpack.c.b16 %v1891, %v1886
    %v2107 = vpack.c.b16 %v1892, %v1887
    %v2108 = vpack.c.b16 %v1893, %v1888
    %v2109 = vpack.c.b16 %v1894, %v1889
    %v2110 = vpack.c.b16 %v1895, %v1890
    %v2111 = vpack.c.b16 %v1901, %v1896
    %v2112 = vpack.c.b16 %v1902, %v1897
    %v2113 = vpack.c.b16 %v1903, %v1898
    %v2114 = vpack.c.b16 %v1904, %v1899
    %v2115 = vpack.c.b16 %v1905, %v1900
    %v2116 = vpack.c.b16 %v1911, %v1906
    %v2117 = vpack.c.b16 %v1912, %v1907
    %v2118 = vpack.c.b16 %v1913, %v1908
    %v2119 = vpack.c.b16 %v1914, %v1909
    %v2120 = vpack.c.b16 %v1915, %v1910
    %v2121 = vpack.c.b16 %v1921, %v1916
    %v2122 = vpack.c.b16 %v1922, %v1917
    %v2123 = vpack.c.b16 %v1923, %v1918
    %v2124 = vpack.c.b16 %v1924, %v1919
    %v2125 = vpack.c.b16 %v1925, %v1920
    %v2126 = vpack.c.b16 %v1931, %v1926
    %v2127 = vpack.c.b16 %v1932, %v1927
    %v2128 = vpack.c.b16 %v1933, %v1928
    %v2129 = vpack.c.b16 %v1934, %v1929
    %v2130 = vpack.c.b16 %v1935, %v1930
    %v2131 = vpack.c.b16 %v1941, %v1936
    %v2132 = vpack.c.b16 %v1942, %v1937
    %v2133 = vpack.c.b16 %v1943, %v1938
    %v2134 = vpack.c.b16 %v1944, %v1939
    %v2135 = vpack.c.b16 %v1945, %v1940
    %v2136 = vpack.c.b16 %v1951, %v1946
    %v2137 = vpack.c.b16 %v1952, %v1947
    %v2138 = vpack.c.b16 %v1953, %v1948
    %v2139 = vpack.c.b16 %v1954, %v1949
    %v2140 = vpack.c.b16 %v1955, %v1950
    %v2141 = vpack.c.b16 %v1961, %v1956
    %v2142 = vpack.c.b16 %v1962, %v1957
    %v2143 = vpack.c.b16 %v1963, %v1958
    %v2144 = vpack.c.b16 %v1964, %v1959
    %v2145 = vpack.c.b16 %v1965, %v1960
    %vm2326 = vcmask 523264
    %v2328 = vsel %vm2326, %v1146, 0
    %2330 = vmatprep.subr.bf16.mxu0 %v1967
    %2331 = vmatpush1.bf16.msra.mxu0 %v1966
    %2332 = vmatprep.subr.bf16.mxu0 %v1972
    %2333 = vmatpush1.bf16.msra.mxu0 %v1971
    %2334 = vmatprep.subr.bf16.mxu0 %v1977
    %2335 = vmatpush1.bf16.msra.mxu0 %v1976
    %2336 = vmatprep.subr.bf16.mxu0 %v1982
    %2337 = vmatpush1.bf16.msra.mxu0 %v1981
    %2338 = vmatprep.subr.bf16.mxu0 %v1987
    %2339 = vmatpush1.bf16.msra.mxu0 %v1986
    %2340 = vmatprep.subr.bf16.mxu0 %v1992
    %2341 = vmatpush1.bf16.msra.mxu0 %v1991
    %2342 = vmatprep.subr.bf16.mxu0 %v1997
    %2343 = vmatpush1.bf16.msra.mxu0 %v1996
    %2344 = vmatprep.subr.bf16.mxu0 %v2002
    %2345 = vmatpush1.bf16.msra.mxu0 %v2001
    %2346 = vmatprep.subr.bf16.mxu0 %v2007
    %2347 = vmatpush1.bf16.msra.mxu0 %v2006
    %2348 = vmatprep.subr.bf16.mxu0 %v2012
    %2349 = vmatpush1.bf16.msra.mxu0 %v2011
    %2350 = vmatprep.subr.bf16.mxu0 %v2017
    %2351 = vmatpush1.bf16.msra.mxu0 %v2016
    %2352 = vmatprep.subr.bf16.mxu0 %v2022
    %2353 = vmatpush1.bf16.msra.mxu0 %v2021
    %2354 = vmatprep.subr.bf16.mxu0 %v2027
    %2355 = vmatpush1.bf16.msra.mxu0 %v2026
    %2356 = vmatprep.subr.bf16.mxu0 %v2032
    %2357 = vmatpush1.bf16.msra.mxu0 %v2031
    %2358 = vmatprep.subr.bf16.mxu0 %v2037
    %2359 = vmatpush1.bf16.msra.mxu0 %v2036
    %2360 = vmatprep.subr.bf16.mxu0 %v2042
    %2361 = vmatpush1.bf16.msra.mxu0 %v2041
    %2362 = vmatprep.mubr.bf16.mxu0 %v1143
    %2363 = vmatmul.mubr.bf16.gmra.mrb[0].mxu0 %v1142
    %v2364 = vpop.f32.mrb[0].mxu0
    %v2365 = vadd.f32 %v1368, %v2364
    %v2366 = vpop.f32.mrb[0].mxu0
    %v2367 = vadd.f32 %v1372, %v2366
    %v2368 = vpop.f32.mrb[0].mxu0
    %v2369 = vpop.f32.mrb[0].mxu0
    %2370 = vdwg.mxu0
    %2371 = vmatprep.subr.bf16.mxu0 %v2047
    %2372 = vmatpush1.bf16.msra.mxu0 %v2046
    %2373 = vmatprep.subr.bf16.mxu0 %v2052
    %2374 = vmatpush1.bf16.msra.mxu0 %v2051
    %2375 = vmatprep.subr.bf16.mxu0 %v2057
    %2376 = vmatpush1.bf16.msra.mxu0 %v2056
    %2377 = vmatprep.subr.bf16.mxu0 %v2062
    %2378 = vmatpush1.bf16.msra.mxu0 %v2061
    %2379 = vmatprep.subr.bf16.mxu0 %v2067
    %2380 = vmatpush1.bf16.msra.mxu0 %v2066
    %2381 = vmatprep.subr.bf16.mxu0 %v2072
    %2382 = vmatpush1.bf16.msra.mxu0 %v2071
    %2383 = vmatprep.subr.bf16.mxu0 %v2077
    %2384 = vmatpush1.bf16.msra.mxu0 %v2076
    %2385 = vmatprep.subr.bf16.mxu0 %v2082
    %2386 = vmatpush1.bf16.msra.mxu0 %v2081
    %2387 = vmatprep.subr.bf16.mxu0 %v2087
    %2388 = vmatpush1.bf16.msra.mxu0 %v2086
    %2389 = vmatprep.subr.bf16.mxu0 %v2092
    %2390 = vmatpush1.bf16.msra.mxu0 %v2091
    %2391 = vmatprep.subr.bf16.mxu0 %v2097
    %2392 = vmatpush1.bf16.msra.mxu0 %v2096
    %2393 = vmatprep.subr.bf16.mxu0 %v2102
    %2394 = vmatpush1.bf16.msra.mxu0 %v2101
    %2395 = vmatprep.subr.bf16.mxu0 %v2107
    %2396 = vmatpush1.bf16.msra.mxu0 %v2106
    %2397 = vmatprep.subr.bf16.mxu0 %v2112
    %2398 = vmatpush1.bf16.msra.mxu0 %v2111
    %2399 = vmatprep.subr.bf16.mxu0 %v2117
    %2400 = vmatpush1.bf16.msra.mxu0 %v2116
    %2401 = vmatprep.subr.bf16.mxu0 %v2122
    %2402 = vmatpush1.bf16.msra.mxu0 %v2121
    %2403 = vmatprep.mubr.bf16.mxu0 %v1145
    %2404 = vmatmul.mubr.bf16.gmra.mrb[0].mxu0 %v1144
    %v2405 = vpop.f32.mrb[0].mxu0
    %v2406 = vadd.f32 %v2365, %v2405
    %v2407 = vpop.f32.mrb[0].mxu0
    %v2408 = vadd.f32 %v2367, %v2407
    %v2409 = vpop.f32.mrb[0].mxu0
    %v2410 = vpop.f32.mrb[0].mxu0
    %2411 = vdwg.mxu0
    %2412 = vmatprep.subr.bf16.mxu0 %v2127
    %2413 = vmatpush1.bf16.msra.mxu0 %v2126
    %2414 = vmatprep.subr.bf16.mxu0 %v2132
    %2415 = vmatpush1.bf16.msra.mxu0 %v2131
    %2416 = vmatprep.subr.bf16.mxu0 %v2137
    %2417 = vmatpush1.bf16.msra.mxu0 %v2136
    %2418 = vmatprep.subr.bf16.mxu0 %v2142
    %2419 = vmatpush1.bf16.msra.mxu0 %v2141
    %2420 = vmatprep.subr.bf16.mxu0 0
    %2421 = vmatpush1.bf16.msra.mxu0 0
    %2422 = vmatprep.subr.bf16.mxu0 0
    %2423 = vmatpush1.bf16.msra.mxu0 0
    %2424 = vmatprep.subr.bf16.mxu0 0
    %2425 = vmatpush1.bf16.msra.mxu0 0
    %2426 = vmatprep.subr.bf16.mxu0 0
    %2427 = vmatpush1.bf16.msra.mxu0 0
    %2428 = vmatprep.subr.bf16.mxu0 0
    %2429 = vmatpush1.bf16.msra.mxu0 0
    %2430 = vmatprep.subr.bf16.mxu0 0
    %2431 = vmatpush1.bf16.msra.mxu0 0
    %2432 = vmatprep.subr.bf16.mxu0 0
    %2433 = vmatpush1.bf16.msra.mxu0 0
    %2434 = vmatprep.subr.bf16.mxu0 0
    %2435 = vmatpush1.bf16.msra.mxu0 0
    %2436 = vmatprep.subr.bf16.mxu0 0
    %2437 = vmatpush1.bf16.msra.mxu0 0
    %2438 = vmatprep.subr.bf16.mxu0 0
    %2439 = vmatpush1.bf16.msra.mxu0 0
    %2440 = vmatprep.subr.bf16.mxu0 0
    %2441 = vmatpush1.bf16.msra.mxu0 0
    %2442 = vmatprep.subr.bf16.mxu0 0
    %2443 = vmatpush1.bf16.msra.mxu0 0
    %2444 = vmatprep.mubr.bf16.mxu0 0
    %2445 = vmatmul.mubr.bf16.gmra.mrb[0].mxu0 %v2328
    %v2446 = vpop.f32.mrb[0].mxu0
    %v2447 = vadd.f32 %v2406, %v2446
    %v2448 = vpop.f32.mrb[0].mxu0
    %v2449 = vadd.f32 %v2408, %v2448
    %v2450 = vpop.f32.mrb[0].mxu0
    %v2451 = vpop.f32.mrb[0].mxu0
    %2452 = vdwg.mxu0
    %2453 = vmatprep.subr.bf16.mxu0 %v1969
    %2454 = vmatpush1.bf16.msra.mxu0 %v1968
    %2455 = vmatprep.subr.bf16.mxu0 %v1974
    %2456 = vmatpush1.bf16.msra.mxu0 %v1973
    %2457 = vmatprep.subr.bf16.mxu0 %v1979
    %2458 = vmatpush1.bf16.msra.mxu0 %v1978
    %2459 = vmatprep.subr.bf16.mxu0 %v1984
    %2460 = vmatpush1.bf16.msra.mxu0 %v1983
    %2461 = vmatprep.subr.bf16.mxu0 %v1989
    %2462 = vmatpush1.bf16.msra.mxu0 %v1988
    %2463 = vmatprep.subr.bf16.mxu0 %v1994
    %2464 = vmatpush1.bf16.msra.mxu0 %v1993
    %2465 = vmatprep.subr.bf16.mxu0 %v1999
    %2466 = vmatpush1.bf16.msra.mxu0 %v1998
    %2467 = vmatprep.subr.bf16.mxu0 %v2004
    %2468 = vmatpush1.bf16.msra.mxu0 %v2003
    %2469 = vmatprep.subr.bf16.mxu0 %v2009
    %2470 = vmatpush1.bf16.msra.mxu0 %v2008
    %2471 = vmatprep.subr.bf16.mxu0 %v2014
    %2472 = vmatpush1.bf16.msra.mxu0 %v2013
    %2473 = vmatprep.subr.bf16.mxu0 %v2019
    %2474 = vmatpush1.bf16.msra.mxu0 %v2018
    %2475 = vmatprep.subr.bf16.mxu0 %v2024
    %2476 = vmatpush1.bf16.msra.mxu0 %v2023
    %2477 = vmatprep.subr.bf16.mxu0 %v2029
    %2478 = vmatpush1.bf16.msra.mxu0 %v2028
    %2479 = vmatprep.subr.bf16.mxu0 %v2034
    %2480 = vmatpush1.bf16.msra.mxu0 %v2033
    %2481 = vmatprep.subr.bf16.mxu0 %v2039
    %2482 = vmatpush1.bf16.msra.mxu0 %v2038
    %2483 = vmatprep.subr.bf16.mxu0 %v2044
    %2484 = vmatpush1.bf16.msra.mxu0 %v2043
    %2485 = vmatprep.mubr.bf16.mxu0 %v1143
    %2486 = vmatmul.mubr.bf16.gmra.mrb[0].mxu0 %v1142
    %v2487 = vpop.f32.mrb[0].mxu0
    %v2488 = vadd.f32 %v1376, %v2487
    %v2489 = vpop.f32.mrb[0].mxu0
    %v2490 = vadd.f32 %v1380, %v2489
    %v2491 = vpop.f32.mrb[0].mxu0
    %v2492 = vpop.f32.mrb[0].mxu0
    %2493 = vdwg.mxu0
    %2494 = vmatprep.subr.bf16.mxu0 %v2049
    %2495 = vmatpush1.bf16.msra.mxu0 %v2048
    %2496 = vmatprep.subr.bf16.mxu0 %v2054
    %2497 = vmatpush1.bf16.msra.mxu0 %v2053
    %2498 = vmatprep.subr.bf16.mxu0 %v2059
    %2499 = vmatpush1.bf16.msra.mxu0 %v2058
    %2500 = vmatprep.subr.bf16.mxu0 %v2064
    %2501 = vmatpush1.bf16.msra.mxu0 %v2063
    %2502 = vmatprep.subr.bf16.mxu0 %v2069
    %2503 = vmatpush1.bf16.msra.mxu0 %v2068
    %2504 = vmatprep.subr.bf16.mxu0 %v2074
    %2505 = vmatpush1.bf16.msra.mxu0 %v2073
    %2506 = vmatprep.subr.bf16.mxu0 %v2079
    %2507 = vmatpush1.bf16.msra.mxu0 %v2078
    %2508 = vmatprep.subr.bf16.mxu0 %v2084
    %2509 = vmatpush1.bf16.msra.mxu0 %v2083
    %2510 = vmatprep.subr.bf16.mxu0 %v2089
    %2511 = vmatpush1.bf16.msra.mxu0 %v2088
    %2512 = vmatprep.subr.bf16.mxu0 %v2094
    %2513 = vmatpush1.bf16.msra.mxu0 %v2093
    %2514 = vmatprep.subr.bf16.mxu0 %v2099
    %2515 = vmatpush1.bf16.msra.mxu0 %v2098
    %2516 = vmatprep.subr.bf16.mxu0 %v2104
    %2517 = vmatpush1.bf16.msra.mxu0 %v2103
    %2518 = vmatprep.subr.bf16.mxu0 %v2109
    %2519 = vmatpush1.bf16.msra.mxu0 %v2108
    %2520 = vmatprep.subr.bf16.mxu0 %v2114
    %2521 = vmatpush1.bf16.msra.mxu0 %v2113
    %2522 = vmatprep.subr.bf16.mxu0 %v2119
    %2523 = vmatpush1.bf16.msra.mxu0 %v2118
    %2524 = vmatprep.subr.bf16.mxu0 %v2124
    %2525 = vmatpush1.bf16.msra.mxu0 %v2123
    %2526 = vmatprep.mubr.bf16.mxu0 %v1145
    %2527 = vmatmul.mubr.bf16.gmra.mrb[0].mxu0 %v1144
    %v2528 = vpop.f32.mrb[0].mxu0
    %v2529 = vadd.f32 %v2488, %v2528
    %v2530 = vpop.f32.mrb[0].mxu0
    %v2531 = vadd.f32 %v2490, %v2530
    %v2532 = vpop.f32.mrb[0].mxu0
    %v2533 = vpop.f32.mrb[0].mxu0
    %2534 = vdwg.mxu0
    %2535 = vmatprep.subr.bf16.mxu0 %v2129
    %2536 = vmatpush1.bf16.msra.mxu0 %v2128
    %2537 = vmatprep.subr.bf16.mxu0 %v2134
    %2538 = vmatpush1.bf16.msra.mxu0 %v2133
    %2539 = vmatprep.subr.bf16.mxu0 %v2139
    %2540 = vmatpush1.bf16.msra.mxu0 %v2138
    %2541 = vmatprep.subr.bf16.mxu0 %v2144
    %2542 = vmatpush1.bf16.msra.mxu0 %v2143
    %2543 = vmatprep.subr.bf16.mxu0 0
    %2544 = vmatpush1.bf16.msra.mxu0 0
    %2545 = vmatprep.subr.bf16.mxu0 0
    %2546 = vmatpush1.bf16.msra.mxu0 0
    %2547 = vmatprep.subr.bf16.mxu0 0
    %2548 = vmatpush1.bf16.msra.mxu0 0
    %2549 = vmatprep.subr.bf16.mxu0 0
    %2550 = vmatpush1.bf16.msra.mxu0 0
    %2551 = vmatprep.subr.bf16.mxu0 0
    %2552 = vmatpush1.bf16.msra.mxu0 0
    %2553 = vmatprep.subr.bf16.mxu0 0
    %2554 = vmatpush1.bf16.msra.mxu0 0
    %2555 = vmatprep.subr.bf16.mxu0 0
    %2556 = vmatpush1.bf16.msra.mxu0 0
    %2557 = vmatprep.subr.bf16.mxu0 0
    %2558 = vmatpush1.bf16.msra.mxu0 0
    %2559 = vmatprep.subr.bf16.mxu0 0
    %2560 = vmatpush1.bf16.msra.mxu0 0
    %2561 = vmatprep.subr.bf16.mxu0 0
    %2562 = vmatpush1.bf16.msra.mxu0 0
    %2563 = vmatprep.subr.bf16.mxu0 0
    %2564 = vmatpush1.bf16.msra.mxu0 0
    %2565 = vmatprep.subr.bf16.mxu0 0
    %2566 = vmatpush1.bf16.msra.mxu0 0
    %2567 = vmatprep.mubr.bf16.mxu0 0
    %2568 = vmatmul.mubr.bf16.gmra.mrb[0].mxu0 %v2328
    %v2569 = vpop.f32.mrb[0].mxu0
    %v2570 = vadd.f32 %v2529, %v2569
    %v2571 = vpop.f32.mrb[0].mxu0
    %v2572 = vadd.f32 %v2531, %v2571
    %v2573 = vpop.f32.mrb[0].mxu0
    %v2574 = vpop.f32.mrb[0].mxu0
    %2575 = vdwg.mxu0
    %2576 = vmatprep.subr.bf16.mxu0 0
    %2577 = vmatpush1.bf16.msra.mxu0 %v1970
    %2578 = vmatprep.subr.bf16.mxu0 0
    %2579 = vmatpush1.bf16.msra.mxu0 %v1975
    %2580 = vmatprep.subr.bf16.mxu0 0
    %2581 = vmatpush1.bf16.msra.mxu0 %v1980
    %2582 = vmatprep.subr.bf16.mxu0 0
    %2583 = vmatpush1.bf16.msra.mxu0 %v1985
    %2584 = vmatprep.subr.bf16.mxu0 0
    %2585 = vmatpush1.bf16.msra.mxu0 %v1990
    %2586 = vmatprep.subr.bf16.mxu0 0
    %2587 = vmatpush1.bf16.msra.mxu0 %v1995
    %2588 = vmatprep.subr.bf16.mxu0 0
    %2589 = vmatpush1.bf16.msra.mxu0 %v2000
    %2590 = vmatprep.subr.bf16.mxu0 0
    %2591 = vmatpush1.bf16.msra.mxu0 %v2005
    %2592 = vmatprep.subr.bf16.mxu0 0
    %2593 = vmatpush1.bf16.msra.mxu0 %v2010
    %2594 = vmatprep.subr.bf16.mxu0 0
    %2595 = vmatpush1.bf16.msra.mxu0 %v2015
    %2596 = vmatprep.subr.bf16.mxu0 0
    %2597 = vmatpush1.bf16.msra.mxu0 %v2020
    %2598 = vmatprep.subr.bf16.mxu0 0
    %2599 = vmatpush1.bf16.msra.mxu0 %v2025
    %2600 = vmatprep.subr.bf16.mxu0 0
    %2601 = vmatpush1.bf16.msra.mxu0 %v2030
    %2602 = vmatprep.subr.bf16.mxu0 0
    %2603 = vmatpush1.bf16.msra.mxu0 %v2035
    %2604 = vmatprep.subr.bf16.mxu0 0
    %2605 = vmatpush1.bf16.msra.mxu0 %v2040
    %2606 = vmatprep.subr.bf16.mxu0 0
    %2607 = vmatpush1.bf16.msra.mxu0 %v2045
    %2608 = vmatprep.mubr.bf16.mxu0 %v1143
    %2609 = vmatmul.mubr.bf16.gmra.mrb[0].mxu0 %v1142
    %v2610 = vpop.f32.mrb[0].mxu0
    %v2611 = vadd.f32 %v1384, %v2610
    %v2612 = vpop.f32.mrb[0].mxu0
    %v2613 = vpop.f32.mrb[0].mxu0
    %v2614 = vpop.f32.mrb[0].mxu0
    %2615 = vdwg.mxu0
    %2616 = vmatprep.subr.bf16.mxu0 0
    %2617 = vmatpush1.bf16.msra.mxu0 %v2050
    %2618 = vmatprep.subr.bf16.mxu0 0
    %2619 = vmatpush1.bf16.msra.mxu0 %v2055
    %2620 = vmatprep.subr.bf16.mxu0 0
    %2621 = vmatpush1.bf16.msra.mxu0 %v2060
    %2622 = vmatprep.subr.bf16.mxu0 0
    %2623 = vmatpush1.bf16.msra.mxu0 %v2065
    %2624 = vmatprep.subr.bf16.mxu0 0
    %2625 = vmatpush1.bf16.msra.mxu0 %v2070
    %2626 = vmatprep.subr.bf16.mxu0 0
    %2627 = vmatpush1.bf16.msra.mxu0 %v2075
    %2628 = vmatprep.subr.bf16.mxu0 0
    %2629 = vmatpush1.bf16.msra.mxu0 %v2080
    %2630 = vmatprep.subr.bf16.mxu0 0
    %2631 = vmatpush1.bf16.msra.mxu0 %v2085
    %2632 = vmatprep.subr.bf16.mxu0 0
    %2633 = vmatpush1.bf16.msra.mxu0 %v2090
    %2634 = vmatprep.subr.bf16.mxu0 0
    %2635 = vmatpush1.bf16.msra.mxu0 %v2095
    %2636 = vmatprep.subr.bf16.mxu0 0
    %2637 = vmatpush1.bf16.msra.mxu0 %v2100
    %2638 = vmatprep.subr.bf16.mxu0 0
    %2639 = vmatpush1.bf16.msra.mxu0 %v2105
    %2640 = vmatprep.subr.bf16.mxu0 0
    %2641 = vmatpush1.bf16.msra.mxu0 %v2110
    %2642 = vmatprep.subr.bf16.mxu0 0
    %2643 = vmatpush1.bf16.msra.mxu0 %v2115
    %2644 = vmatprep.subr.bf16.mxu0 0
    %2645 = vmatpush1.bf16.msra.mxu0 %v2120
    %2646 = vmatprep.subr.bf16.mxu0 0
    %2647 = vmatpush1.bf16.msra.mxu0 %v2125
    %2648 = vmatprep.mubr.bf16.mxu0 %v1145
    %2649 = vmatmul.mubr.bf16.gmra.mrb[0].mxu0 %v1144
    %v2650 = vpop.f32.mrb[0].mxu0
    %v2651 = vadd.f32 %v2611, %v2650
    %v2652 = vpop.f32.mrb[0].mxu0
    %v2653 = vpop.f32.mrb[0].mxu0
    %v2654 = vpop.f32.mrb[0].mxu0
    %2655 = vdwg.mxu0
    %2656 = vmatprep.subr.bf16.mxu0 0
    %2657 = vmatpush1.bf16.msra.mxu0 %v2130
    %2658 = vmatprep.subr.bf16.mxu0 0
    %2659 = vmatpush1.bf16.msra.mxu0 %v2135
    %2660 = vmatprep.subr.bf16.mxu0 0
    %2661 = vmatpush1.bf16.msra.mxu0 %v2140
    %2662 = vmatprep.subr.bf16.mxu0 0
    %2663 = vmatpush1.bf16.msra.mxu0 %v2145
    %2664 = vmatprep.subr.bf16.mxu0 0
    %2665 = vmatpush1.bf16.msra.mxu0 0
    %2666 = vmatprep.subr.bf16.mxu0 0
    %2667 = vmatpush1.bf16.msra.mxu0 0
    %2668 = vmatprep.subr.bf16.mxu0 0
    %2669 = vmatpush1.bf16.msra.mxu0 0
    %2670 = vmatprep.subr.bf16.mxu0 0
    %2671 = vmatpush1.bf16.msra.mxu0 0
    %2672 = vmatprep.subr.bf16.mxu0 0
    %2673 = vmatpush1.bf16.msra.mxu0 0
    %2674 = vmatprep.subr.bf16.mxu0 0
    %2675 = vmatpush1.bf16.msra.mxu0 0
    %2676 = vmatprep.subr.bf16.mxu0 0
    %2677 = vmatpush1.bf16.msra.mxu0 0
    %2678 = vmatprep.subr.bf16.mxu0 0
    %2679 = vmatpush1.bf16.msra.mxu0 0
    %2680 = vmatprep.subr.bf16.mxu0 0
    %2681 = vmatpush1.bf16.msra.mxu0 0
    %2682 = vmatprep.subr.bf16.mxu0 0
    %2683 = vmatpush1.bf16.msra.mxu0 0
    %2684 = vmatprep.subr.bf16.mxu0 0
    %2685 = vmatpush1.bf16.msra.mxu0 0
    %2686 = vmatprep.subr.bf16.mxu0 0
    %2687 = vmatpush1.bf16.msra.mxu0 0
    %2688 = vmatprep.mubr.bf16.mxu0 0
    %2689 = vmatmul.mubr.bf16.gmra.mrb[0].mxu0 %v2328
    %v2690 = vpop.f32.mrb[0].mxu0
    %v2691 = vadd.f32 %v2651, %v2690
    %v2692 = vpop.f32.mrb[0].mxu0
    %v2693 = vpop.f32.mrb[0].mxu0
    %v2694 = vpop.f32.mrb[0].mxu0
    %2695 = vdwg.mxu0
    %v2696 = vmax.f32 %v2447, 0.0
    %v2697 = vmax.f32 %v2449, 0.0
    %v2698 = vmax.f32 %v2570, 0.0
    %v2699 = vmax.f32 %v2572, 0.0
    %v2700 = vmax.f32 %v2691, 0.0
    %v2701 = vpack.c.bf16 %v2696, %v2696
    %v2702 = vpack.c.bf16 %v2697, %v2697
    %v2703 = vpack.c.bf16 %v2698, %v2698
    %v2704 = vpack.c.bf16 %v2699, %v2699
    %v2705 = vpack.c.bf16 %v2700, %v2700
    %v2706 = vld [vmem:[%s5] sm:$0xf]
    %v2707 = vld [vmem:[%s5 + $0x4] sm:$0xf]
    %v2708 = vld [vmem:[%s5 + $0x8] sm:$0xf]
    %v2709 = vld [vmem:[%s5 + $0xc] sm:$0xf]
    %v2710 = vld [vmem:[%s5 + $0x10] sm:$0xf]
    %v2711 = vld [vmem:[%s5 + $0x14] sm:$0xf]
    %v2712 = vld [vmem:[%s5 + $0x18] sm:$0xf]
    %v2713 = vld [vmem:[%s5 + $0x1c] sm:$0xf]
    %v2714 = vld [vmem:[%s5 + $0x20] sm:$0xf]
    %v2715 = vld [vmem:[%s5 + $0x24] sm:$0xf]
    %v2716 = vld [vmem:[%s5 + $0x28] sm:$0xf]
    %v2717 = vld [vmem:[%s5 + $0x2c] sm:$0xf]
    %v2718 = vld [vmem:[%s5 + $0x30] sm:$0xf]
    %v2719 = vld [vmem:[%s5 + $0x34] sm:$0xf]
    %v2720 = vld [vmem:[%s5 + $0x38] sm:$0xf]
    %v2721 = vld [vmem:[%s5 + $0x3c] sm:$0xf]
    %v2722 = vld [vmem:[%s5 + $0x40] sm:$0xf]
    %v2723 = vld [vmem:[%s5 + $0x44] sm:$0xf]
    %v2724 = vld [vmem:[%s5 + $0x48] sm:$0xf]
    %v2725 = vld [vmem:[%s5 + $0x4c] sm:$0xf]
    %v2726 = vld [vmem:[%s5 + $0x50] sm:$0xf]
    %v2727 = vld [vmem:[%s5 + $0x54] sm:$0xf]
    %v2728 = vld [vmem:[%s5 + $0x58] sm:$0xf]
    %v2729 = vld [vmem:[%s5 + $0x5c] sm:$0xf]
    %v2730 = vld [vmem:[%s5 + $0x60] sm:$0xf]
    %v2731 = vld [vmem:[%s5 + $0x64] sm:$0xf]
    %v2732 = vld [vmem:[%s5 + $0x68] sm:$0xf]
    %v2733 = vld [vmem:[%s5 + $0x6c] sm:$0xf]
    %v2734 = vld [vmem:[%s5 + $0x70] sm:$0xf]
    %v2735 = vld [vmem:[%s5 + $0x74] sm:$0xf]
    %v2736 = vld [vmem:[%s5 + $0x78] sm:$0xf]
    %v2737 = vld [vmem:[%s5 + $0x7c] sm:$0xf]
    %v2738 = vld [vmem:[%s5 + $0x80] sm:$0xf]
    %v2739 = vld [vmem:[%s5 + $0x84] sm:$0xf]
    %v2740 = vld [vmem:[%s5 + $0x88] sm:$0xf]
    %v2741 = vld [vmem:[%s5 + $0x8c] sm:$0xf]
    %v2742 = vld [vmem:[%s5 + $0x90] sm:$0xf]
    %v2743 = vld [vmem:[%s5 + $0x94] sm:$0xf]
    %v2744 = vld [vmem:[%s5 + $0x98] sm:$0xf]
    %v2745 = vld [vmem:[%s5 + $0x9c] sm:$0xf]
    %v2746 = vld [vmem:[%s5 + $0xa0] sm:$0xf]
    %v2747 = vld [vmem:[%s5 + $0xa4] sm:$0xf]
    %v2748 = vld [vmem:[%s5 + $0xa8] sm:$0xf]
    %v2749 = vld [vmem:[%s5 + $0xac] sm:$0xf]
    %v2750 = vld [vmem:[%s5 + $0xb0] sm:$0xf]
    %v2751 = vld [vmem:[%s5 + $0xb4] sm:$0xf]
    %v2752 = vld [vmem:[%s5 + $0xb8] sm:$0xf]
    %v2753 = vld [vmem:[%s5 + $0xbc] sm:$0xf]
    %v2754 = vld [vmem:[%s5 + $0xc0] sm:$0xf]
    %v2755 = vld [vmem:[%s5 + $0xc4] sm:$0xf]
    %v2756 = vld [vmem:[%s5 + $0xc8] sm:$0xf]
    %v2757 = vld [vmem:[%s5 + $0xcc] sm:$0xf]
    %v2758 = vld [vmem:[%s5 + $0xd0] sm:$0xf]
    %v2759 = vld [vmem:[%s5 + $0xd4] sm:$0xf]
    %v2760 = vld [vmem:[%s5 + $0xd8] sm:$0xf]
    %v2761 = vld [vmem:[%s5 + $0xdc] sm:$0xf]
    %v2762 = vld [vmem:[%s5 + $0xe0] sm:$0xf]
    %v2763 = vld [vmem:[%s5 + $0xe4] sm:$0xf]
    %v2764 = vld [vmem:[%s5 + $0xe8] sm:$0xf]
    %v2765 = vld [vmem:[%s5 + $0xec] sm:$0xf]
    %v2766 = vld [vmem:[%s5 + $0xf0] sm:$0xf]
    %v2767 = vld [vmem:[%s5 + $0xf4] sm:$0xf]
    %v2768 = vld [vmem:[%s5 + $0xf8] sm:$0xf]
    %v2769 = vld [vmem:[%s5 + $0xfc] sm:$0xf]
    %v2770 = vld [vmem:[%s5 + $0x100] sm:$0xf]
    %v2771 = vld [vmem:[%s5 + $0x104] sm:$0xf]
    %v2772 = vld [vmem:[%s5 + $0x108] sm:$0xf]
    %v2773 = vld [vmem:[%s5 + $0x10c] sm:$0xf]
    %v2774 = vld [vmem:[%s5 + $0x110] sm:$0xf]
    %v2775 = vld [vmem:[%s5 + $0x114] sm:$0xf]
    %v2776 = vld [vmem:[%s5 + $0x118] sm:$0xf]
    %v2777 = vld [vmem:[%s5 + $0x11c] sm:$0xf]
    %v2778 = vld [vmem:[%s5 + $0x120] sm:$0xf]
    %v2779 = vld [vmem:[%s5 + $0x124] sm:$0xf]
    %v2780 = vld [vmem:[%s5 + $0x128] sm:$0xf]
    %v2781 = vld [vmem:[%s6] sm:$0x1]
    %v2783 = vlaneseq
    %v2784 = vshrl.u32 %v2783, 7
    %v2785 = vsub.s32 0, %v2784
    %v2786 = vrot.slane %v2781, %v2785
    %v2863 = vunpack.c.l.b16 %v2706
    %v2864 = vunpack.c.l.b16 %v2707
    %v2865 = vunpack.c.l.b16 %v2708
    %v2866 = vunpack.c.l.b16 %v2709
    %v2867 = vunpack.c.l.b16 %v2710
    %v2868 = vunpack.c.l.b16 %v2711
    %v2869 = vunpack.c.l.b16 %v2712
    %v2870 = vunpack.c.l.b16 %v2713
    %v2871 = vunpack.c.l.b16 %v2714
    %v2872 = vunpack.c.l.b16 %v2715
    %v2873 = vunpack.c.l.b16 %v2716
    %v2874 = vunpack.c.l.b16 %v2717
    %v2875 = vunpack.c.l.b16 %v2718
    %v2876 = vunpack.c.l.b16 %v2719
    %v2877 = vunpack.c.l.b16 %v2720
    %v2878 = vunpack.c.l.b16 %v2721
    %v2879 = vunpack.c.l.b16 %v2722
    %v2880 = vunpack.c.l.b16 %v2723
    %v2881 = vunpack.c.l.b16 %v2724
    %v2882 = vunpack.c.l.b16 %v2725
    %v2883 = vunpack.c.l.b16 %v2726
    %v2884 = vunpack.c.l.b16 %v2727
    %v2885 = vunpack.c.l.b16 %v2728
    %v2886 = vunpack.c.l.b16 %v2729
    %v2887 = vunpack.c.l.b16 %v2730
    %v2888 = vunpack.c.l.b16 %v2731
    %v2889 = vunpack.c.l.b16 %v2732
    %v2890 = vunpack.c.l.b16 %v2733
    %v2891 = vunpack.c.l.b16 %v2734
    %v2892 = vunpack.c.l.b16 %v2735
    %v2893 = vunpack.c.l.b16 %v2736
    %v2894 = vunpack.c.l.b16 %v2737
    %v2895 = vunpack.c.l.b16 %v2738
    %v2896 = vunpack.c.l.b16 %v2739
    %v2897 = vunpack.c.l.b16 %v2740
    %v2898 = vunpack.c.l.b16 %v2741
    %v2899 = vunpack.c.l.b16 %v2742
    %v2900 = vunpack.c.l.b16 %v2743
    %v2901 = vunpack.c.l.b16 %v2744
    %v2902 = vunpack.c.l.b16 %v2745
    %v2903 = vunpack.c.l.b16 %v2746
    %v2904 = vunpack.c.l.b16 %v2747
    %v2905 = vunpack.c.l.b16 %v2748
    %v2906 = vunpack.c.l.b16 %v2749
    %v2907 = vunpack.c.l.b16 %v2750
    %v2908 = vunpack.c.l.b16 %v2751
    %v2909 = vunpack.c.l.b16 %v2752
    %v2910 = vunpack.c.l.b16 %v2753
    %v2911 = vunpack.c.l.b16 %v2754
    %v2912 = vunpack.c.l.b16 %v2755
    %v2913 = vunpack.c.l.b16 %v2756
    %v2914 = vunpack.c.l.b16 %v2757
    %v2915 = vunpack.c.l.b16 %v2758
    %v2916 = vunpack.c.l.b16 %v2759
    %v2917 = vunpack.c.l.b16 %v2760
    %v2918 = vunpack.c.l.b16 %v2761
    %v2919 = vunpack.c.l.b16 %v2762
    %v2920 = vunpack.c.l.b16 %v2763
    %v2921 = vunpack.c.l.b16 %v2764
    %v2922 = vunpack.c.l.b16 %v2765
    %v2923 = vunpack.c.l.b16 %v2766
    %v2924 = vunpack.c.l.b16 %v2767
    %v2925 = vunpack.c.l.b16 %v2768
    %v2926 = vunpack.c.l.b16 %v2769
    %v2927 = vunpack.c.l.b16 %v2770
    %v2928 = vunpack.c.l.b16 %v2771
    %v2929 = vunpack.c.l.b16 %v2772
    %v2930 = vunpack.c.l.b16 %v2773
    %v2931 = vunpack.c.l.b16 %v2774
    %v2932 = vunpack.c.l.b16 %v2775
    %v2933 = vunpack.c.l.b16 %v2776
    %v2934 = vunpack.c.l.b16 %v2777
    %v2935 = vunpack.c.l.b16 %v2778
    %v2936 = vunpack.c.l.b16 %v2779
    %v2937 = vunpack.c.l.b16 %v2780
    %v2938 = vpack.c.b16 %v2864, %v2863
    %v2939 = vpack.c.b16 %v2866, %v2865
    %v2940 = vpack.c.b16 %v2868, %v2867
    %v2941 = vpack.c.b16 %v2870, %v2869
    %v2942 = vpack.c.b16 %v2872, %v2871
    %v2943 = vpack.c.b16 %v2874, %v2873
    %v2944 = vpack.c.b16 %v2876, %v2875
    %v2945 = vpack.c.b16 %v2878, %v2877
    %v2946 = vpack.c.b16 %v2880, %v2879
    %v2947 = vpack.c.b16 %v2882, %v2881
    %v2948 = vpack.c.b16 %v2884, %v2883
    %v2949 = vpack.c.b16 %v2886, %v2885
    %v2950 = vpack.c.b16 %v2888, %v2887
    %v2951 = vpack.c.b16 %v2890, %v2889
    %v2952 = vpack.c.b16 %v2892, %v2891
    %v2953 = vpack.c.b16 %v2894, %v2893
    %v2954 = vpack.c.b16 %v2896, %v2895
    %v2955 = vpack.c.b16 %v2898, %v2897
    %v2956 = vpack.c.b16 %v2900, %v2899
    %v2957 = vpack.c.b16 %v2902, %v2901
    %v2958 = vpack.c.b16 %v2904, %v2903
    %v2959 = vpack.c.b16 %v2906, %v2905
    %v2960 = vpack.c.b16 %v2908, %v2907
    %v2961 = vpack.c.b16 %v2910, %v2909
    %v2962 = vpack.c.b16 %v2912, %v2911
    %v2963 = vpack.c.b16 %v2914, %v2913
    %v2964 = vpack.c.b16 %v2916, %v2915
    %v2965 = vpack.c.b16 %v2918, %v2917
    %v2966 = vpack.c.b16 %v2920, %v2919
    %v2967 = vpack.c.b16 %v2922, %v2921
    %v2968 = vpack.c.b16 %v2924, %v2923
    %v2969 = vpack.c.b16 %v2926, %v2925
    %v2970 = vpack.c.b16 %v2928, %v2927
    %v2971 = vpack.c.b16 %v2930, %v2929
    %v2972 = vpack.c.b16 %v2932, %v2931
    %v2973 = vpack.c.b16 %v2934, %v2933
    %v2974 = vpack.c.b16 %v2936, %v2935
    %v2975 = vpack.c.b16 %v2937, %v2937
    %vm3013 = vcmask 719872
    %v3015 = vsel %vm3013, %v2705, 0
    %v3018 = vsel %vm877, %v2975, 0
    %3020 = vmatprep.subr.bf16.mxu0 0
    %3021 = vmatpush1.bf16.msra.mxu0 %v2938
    %3022 = vmatprep.subr.bf16.mxu0 0
    %3023 = vmatpush1.bf16.msra.mxu0 %v2939
    %3024 = vmatprep.subr.bf16.mxu0 0
    %3025 = vmatpush1.bf16.msra.mxu0 %v2940
    %3026 = vmatprep.subr.bf16.mxu0 0
    %3027 = vmatpush1.bf16.msra.mxu0 %v2941
    %3028 = vmatprep.subr.bf16.mxu0 0
    %3029 = vmatpush1.bf16.msra.mxu0 %v2942
    %3030 = vmatprep.subr.bf16.mxu0 0
    %3031 = vmatpush1.bf16.msra.mxu0 %v2943
    %3032 = vmatprep.subr.bf16.mxu0 0
    %3033 = vmatpush1.bf16.msra.mxu0 %v2944
    %3034 = vmatprep.subr.bf16.mxu0 0
    %3035 = vmatpush1.bf16.msra.mxu0 %v2945
    %3036 = vmatprep.subr.bf16.mxu0 0
    %3037 = vmatpush1.bf16.msra.mxu0 %v2946
    %3038 = vmatprep.subr.bf16.mxu0 0
    %3039 = vmatpush1.bf16.msra.mxu0 %v2947
    %3040 = vmatprep.subr.bf16.mxu0 0
    %3041 = vmatpush1.bf16.msra.mxu0 %v2948
    %3042 = vmatprep.subr.bf16.mxu0 0
    %3043 = vmatpush1.bf16.msra.mxu0 %v2949
    %3044 = vmatprep.subr.bf16.mxu0 0
    %3045 = vmatpush1.bf16.msra.mxu0 %v2950
    %3046 = vmatprep.subr.bf16.mxu0 0
    %3047 = vmatpush1.bf16.msra.mxu0 %v2951
    %3048 = vmatprep.subr.bf16.mxu0 0
    %3049 = vmatpush1.bf16.msra.mxu0 %v2952
    %3050 = vmatprep.subr.bf16.mxu0 0
    %3051 = vmatpush1.bf16.msra.mxu0 %v2953
    %3052 = vmatprep.mubr.bf16.mxu0 %v2702
    %3053 = vmatmul.mubr.bf16.gmra.mrb[0].mxu0 %v2701
    %v3054 = vpop.f32.mrb[0].mxu0
    %v3055 = vadd.f32 %v2786, %v3054
    %v3056 = vpop.f32.mrb[0].mxu0
    %v3057 = vpop.f32.mrb[0].mxu0
    %v3058 = vpop.f32.mrb[0].mxu0
    %3059 = vdwg.mxu0
    %3060 = vmatprep.subr.bf16.mxu0 0
    %3061 = vmatpush1.bf16.msra.mxu0 %v2954
    %3062 = vmatprep.subr.bf16.mxu0 0
    %3063 = vmatpush1.bf16.msra.mxu0 %v2955
    %3064 = vmatprep.subr.bf16.mxu0 0
    %3065 = vmatpush1.bf16.msra.mxu0 %v2956
    %3066 = vmatprep.subr.bf16.mxu0 0
    %3067 = vmatpush1.bf16.msra.mxu0 %v2957
    %3068 = vmatprep.subr.bf16.mxu0 0
    %3069 = vmatpush1.bf16.msra.mxu0 %v2958
    %3070 = vmatprep.subr.bf16.mxu0 0
    %3071 = vmatpush1.bf16.msra.mxu0 %v2959
    %3072 = vmatprep.subr.bf16.mxu0 0
    %3073 = vmatpush1.bf16.msra.mxu0 %v2960
    %3074 = vmatprep.subr.bf16.mxu0 0
    %3075 = vmatpush1.bf16.msra.mxu0 %v2961
    %3076 = vmatprep.subr.bf16.mxu0 0
    %3077 = vmatpush1.bf16.msra.mxu0 %v2962
    %3078 = vmatprep.subr.bf16.mxu0 0
    %3079 = vmatpush1.bf16.msra.mxu0 %v2963
    %3080 = vmatprep.subr.bf16.mxu0 0
    %3081 = vmatpush1.bf16.msra.mxu0 %v2964
    %3082 = vmatprep.subr.bf16.mxu0 0
    %3083 = vmatpush1.bf16.msra.mxu0 %v2965
    %3084 = vmatprep.subr.bf16.mxu0 0
    %3085 = vmatpush1.bf16.msra.mxu0 %v2966
    %3086 = vmatprep.subr.bf16.mxu0 0
    %3087 = vmatpush1.bf16.msra.mxu0 %v2967
    %3088 = vmatprep.subr.bf16.mxu0 0
    %3089 = vmatpush1.bf16.msra.mxu0 %v2968
    %3090 = vmatprep.subr.bf16.mxu0 0
    %3091 = vmatpush1.bf16.msra.mxu0 %v2969
    %3092 = vmatprep.mubr.bf16.mxu0 %v2704
    %3093 = vmatmul.mubr.bf16.gmra.mrb[0].mxu0 %v2703
    %v3094 = vpop.f32.mrb[0].mxu0
    %v3095 = vadd.f32 %v3055, %v3094
    %v3096 = vpop.f32.mrb[0].mxu0
    %v3097 = vpop.f32.mrb[0].mxu0
    %v3098 = vpop.f32.mrb[0].mxu0
    %3099 = vdwg.mxu0
    %3100 = vmatprep.subr.bf16.mxu0 0
    %3101 = vmatpush1.bf16.msra.mxu0 %v2970
    %3102 = vmatprep.subr.bf16.mxu0 0
    %3103 = vmatpush1.bf16.msra.mxu0 %v2971
    %3104 = vmatprep.subr.bf16.mxu0 0
    %3105 = vmatpush1.bf16.msra.mxu0 %v2972
    %3106 = vmatprep.subr.bf16.mxu0 0
    %3107 = vmatpush1.bf16.msra.mxu0 %v2973
    %3108 = vmatprep.subr.bf16.mxu0 0
    %3109 = vmatpush1.bf16.msra.mxu0 %v2974
    %3110 = vmatprep.subr.bf16.mxu0 0
    %3111 = vmatpush1.bf16.msra.mxu0 %v3018
    %3112 = vmatprep.subr.bf16.mxu0 0
    %3113 = vmatpush1.bf16.msra.mxu0 0
    %3114 = vmatprep.subr.bf16.mxu0 0
    %3115 = vmatpush1.bf16.msra.mxu0 0
    %3116 = vmatprep.subr.bf16.mxu0 0
    %3117 = vmatpush1.bf16.msra.mxu0 0
    %3118 = vmatprep.subr.bf16.mxu0 0
    %3119 = vmatpush1.bf16.msra.mxu0 0
    %3120 = vmatprep.subr.bf16.mxu0 0
    %3121 = vmatpush1.bf16.msra.mxu0 0
    %3122 = vmatprep.subr.bf16.mxu0 0
    %3123 = vmatpush1.bf16.msra.mxu0 0
    %3124 = vmatprep.subr.bf16.mxu0 0
    %3125 = vmatpush1.bf16.msra.mxu0 0
    %3126 = vmatprep.subr.bf16.mxu0 0
    %3127 = vmatpush1.bf16.msra.mxu0 0
    %3128 = vmatprep.subr.bf16.mxu0 0
    %3129 = vmatpush1.bf16.msra.mxu0 0
    %3130 = vmatprep.subr.bf16.mxu0 0
    %3131 = vmatpush1.bf16.msra.mxu0 0
    %3132 = vmatprep.mubr.bf16.mxu0 0
    %3133 = vmatmul.mubr.bf16.gmra.mrb[0].mxu0 %v3015
    %v3134 = vpop.f32.mrb[0].mxu0
    %v3135 = vadd.f32 %v3095, %v3134
    %v3136 = vpop.f32.mrb[0].mxu0
    %v3137 = vpop.f32.mrb[0].mxu0
    %v3138 = vpop.f32.mrb[0].mxu0
    %3139 = vdwg.mxu0
    %v3140 = vmax.f32 %v3135, 0.0
    %v3141 = vpack.c.bf16 %v3140, %v3140
    %v3142 = vld [vmem:[%s7] sm:$0xf]
    %v3143 = vld [vmem:[%s7 + $0x4] sm:$0xf]
    %v3144 = vld [vmem:[%s7 + $0x8] sm:$0xf]
    %v3145 = vld [vmem:[%s7 + $0xc] sm:$0xf]
    %v3146 = vld [vmem:[%s7 + $0x10] sm:$0xf]
    %v3147 = vld [vmem:[%s7 + $0x14] sm:$0xf]
    %v3148 = vld [vmem:[%s7 + $0x18] sm:$0xf]
    %v3149 = vld [vmem:[%s7 + $0x1c] sm:$0xf]
    %v3150 = vld [vmem:[%s7 + $0x20] sm:$0xf]
    %v3151 = vld [vmem:[%s7 + $0x24] sm:$0xf]
    %v3152 = vld [vmem:[%s7 + $0x28] sm:$0xf]
    %v3153 = vld [vmem:[%s7 + $0x2c] sm:$0xf]
    %v3154 = vld [vmem:[%s7 + $0x30] sm:$0x3]
    %v3155 = vld [vmem:[%s8] sm:$0x1]
    %v3157 = vlaneseq
    %v3158 = vshrl.u32 %v3157, 7
    %v3159 = vsub.s32 0, %v3158
    %v3160 = vrot.slane %v3155, %v3159
    %v3175 = vunpack.c.l.b16 %v3142
    %v3176 = vunpack.c.l.b16 %v3143
    %v3177 = vunpack.c.l.b16 %v3144
    %v3178 = vunpack.c.l.b16 %v3145
    %v3179 = vunpack.c.l.b16 %v3146
    %v3180 = vunpack.c.l.b16 %v3147
    %v3181 = vunpack.c.l.b16 %v3148
    %v3182 = vunpack.c.l.b16 %v3149
    %v3183 = vunpack.c.l.b16 %v3150
    %v3184 = vunpack.c.l.b16 %v3151
    %v3185 = vunpack.c.l.b16 %v3152
    %v3186 = vunpack.c.l.b16 %v3153
    %v3187 = vunpack.c.l.b16 %v3154
    %v3188 = vpack.c.b16 %v3176, %v3175
    %v3189 = vpack.c.b16 %v3178, %v3177
    %v3190 = vpack.c.b16 %v3180, %v3179
    %v3191 = vpack.c.b16 %v3182, %v3181
    %v3192 = vpack.c.b16 %v3184, %v3183
    %v3193 = vpack.c.b16 %v3186, %v3185
    %v3194 = vpack.c.b16 %v3187, %v3187
    %vm3201 = vcmask 818176
    %v3203 = vsel %vm3201, %v3141, 0
    %vm3205 = vcmask 1041408
    %v3207 = vsel %vm3205, %v3194, 0
    %3209 = vmatprep.subr.bf16.mxu0 0
    %3210 = vmatpush1.bf16.msra.mxu0 %v3188
    %3211 = vmatprep.subr.bf16.mxu0 0
    %3212 = vmatpush1.bf16.msra.mxu0 %v3189
    %3213 = vmatprep.subr.bf16.mxu0 0
    %3214 = vmatpush1.bf16.msra.mxu0 %v3190
    %3215 = vmatprep.subr.bf16.mxu0 0
    %3216 = vmatpush1.bf16.msra.mxu0 %v3191
    %3217 = vmatprep.subr.bf16.mxu0 0
    %3218 = vmatpush1.bf16.msra.mxu0 %v3192
    %3219 = vmatprep.subr.bf16.mxu0 0
    %3220 = vmatpush1.bf16.msra.mxu0 %v3193
    %3221 = vmatprep.subr.bf16.mxu0 0
    %3222 = vmatpush1.bf16.msra.mxu0 %v3207
    %3223 = vmatprep.subr.bf16.mxu0 0
    %3224 = vmatpush1.bf16.msra.mxu0 0
    %3225 = vmatprep.subr.bf16.mxu0 0
    %3226 = vmatpush1.bf16.msra.mxu0 0
    %3227 = vmatprep.subr.bf16.mxu0 0
    %3228 = vmatpush1.bf16.msra.mxu0 0
    %3229 = vmatprep.subr.bf16.mxu0 0
    %3230 = vmatpush1.bf16.msra.mxu0 0
    %3231 = vmatprep.subr.bf16.mxu0 0
    %3232 = vmatpush1.bf16.msra.mxu0 0
    %3233 = vmatprep.subr.bf16.mxu0 0
    %3234 = vmatpush1.bf16.msra.mxu0 0
    %3235 = vmatprep.subr.bf16.mxu0 0
    %3236 = vmatpush1.bf16.msra.mxu0 0
    %3237 = vmatprep.subr.bf16.mxu0 0
    %3238 = vmatpush1.bf16.msra.mxu0 0
    %3239 = vmatprep.subr.bf16.mxu0 0
    %3240 = vmatpush1.bf16.msra.mxu0 0
    %3241 = vmatprep.mubr.bf16.mxu0 0
    %3242 = vmatmul.mubr.bf16.gmra.mrb[0].mxu0 %v3203
    %v3243 = vpop.f32.mrb[0].mxu0
    %v3244 = vadd.f32 %v3160, %v3243
    %v3245 = vpop.f32.mrb[0].mxu0
    %v3246 = vpop.f32.mrb[0].mxu0
    %v3247 = vpop.f32.mrb[0].mxu0
    %3248 = vdwg.mxu0
    %v3249 = vsub.f32 0.0, %v3244
    %v3250 = vmul.f32 %v3249, 1.442695
    %v3251 = vpow.pop %v3250
    %v3252 = vadd.f32 %v3251, 1.0
    %v3253 = vrcp.pop %v3252
    %v3254 = vmul.f32 1.0, %v3253
    %3255 = vst [vmem:[%s9] sm:$0xff] %v3254
    // Predicated region
    $region42: #{cnn_model1_forward.1} parent=1 // pred_check
      _
    $region43: #{cnn_model1_forward.1} parent=1 // pred_check_branch
      %3257 = sbr.rel (0) target = $region45
    $region44: #{cnn_model1_forward.1} parent=1 // pred_region
      _
    $region45: #{cnn_model1_forward.1} parent=1 // pred_fallthru
      _
    // Predicated region
    $region46: #{cnn_model1_forward.1} parent=1 // pred_check
      _
    $region47: #{cnn_model1_forward.1} parent=1 // pred_check_branch
      %3259 = sbr.rel (0) target = $region49
    $region48: #{cnn_model1_forward.1} parent=1 // pred_region
      _
    $region49: #{cnn_model1_forward.1} parent=1 // pred_fallthru
      _
    %3260 = vsyncpa [#allocation3], 1

</llo_original>
